<compile_context>
chip_gen: v5e
topology: v5e:2x2
jax: 0.10.0
libtpu: 0.0.40
codegen_flags: <defaults>
</compile_context>

<pallas_src>
import functools

import jax
import jax.numpy as jnp
from jax import lax
from jax.experimental import pallas as pl
from jax.experimental.pallas import tpu as pltpu


# ----------------------------------------------------------------------------
# small in-kernel helpers
# ----------------------------------------------------------------------------
def _softmax_lastdim(s):
    s = s - jnp.max(s, axis=-1, keepdims=True)
    e = jnp.exp(s)
    return e * pl.reciprocal(jnp.sum(e, axis=-1, keepdims=True), approx=True)


def _mm(a, b):
    # (i, k) @ (k, j) on the MXU, f32 accumulation
    return lax.dot_general(a, b, (((1,), (0,)), ((), ())),
                           preferred_element_type=jnp.float32)


def _mm_t(a, b):
    # (i, d) x (j, d) -> (i, j): contract the last dims of both operands
    return lax.dot_general(a, b, (((1,), (1,)), ((), ())),
                           preferred_element_type=jnp.float32)


# ----------------------------------------------------------------------------
# Kernel A: fused LayerNorm + QKV projection, head-merged lane-dense outputs
# ----------------------------------------------------------------------------
def ln_qkv_kernel(x_ref, gamma_ref, beta_ref, wqkv_ref, q_ref, k_ref, v_ref,
                  *, pad):
    # x_ref: (1, n_pad, C) f32 (first `pad` rows are zeros)
    # gamma/beta: (1, C); wqkv: (C, 3C) with the q scale folded in
    # outputs q/k/v: (1, n_pad, C) f32, head-merged (column c -> head c // d)
    C = x_ref.shape[2]
    x = x_ref[0]
    mu = jnp.mean(x, axis=-1, keepdims=True)
    xc = x - mu
    var = jnp.mean(xc * xc, axis=-1, keepdims=True)
    xn = xc * lax.rsqrt(var + 1e-5) * gamma_ref[...] + beta_ref[...]
    if pad > 0:
        # torch pads the *normed* input with zeros and to_qkv has no bias,
        # so the pad rows must produce zero q/k/v -> mask them out here.
        rows = lax.broadcasted_iota(jnp.int32, (x.shape[0], 1), 0)
        xn = jnp.where(rows >= pad, xn, 0.0)
    qkv = _mm(xn, wqkv_ref[...])                       # (n_pad, 3C)
    q_ref[0] = qkv[:, 0:C].astype(q_ref.dtype)
    k_ref[0] = qkv[:, C:2 * C].astype(k_ref.dtype)
    v_ref[0] = qkv[:, 2 * C:3 * C].astype(v_ref.dtype)


# ----------------------------------------------------------------------------
# Kernel B: Nystrom attention core for one batch element (all heads)
# ----------------------------------------------------------------------------
def nystrom_attn_kernel(q_ref, k_ref, v_ref, ql_ref, kl_ref, a2_ref, init_ref,
                        taps_ref, wout_ref, bout_ref, out_ref,
                        vpad_ref, merged_ref, *, heads, pinv_iters):
    # q/k: (1, Np, C) f32 merged   v: (1, Np, C) bf16 merged
    # ql/kl: (1, M, C) f32 merged landmarks
    # a2: (H, M, M) f32 softmax(sim2)   init: (1, 1) f32
    # taps: (Kr, C) f32 lane-dense conv taps   wout: (C, C) bf16   bout: (1, C)
    # out: (1, Np, C) f32
    # scratch: vpad (Np + Kr - 1, C) f32, merged (Np, C) f32
    Np, C = q_ref.shape[1], q_ref.shape[2]
    M = ql_ref.shape[1]
    d = C // heads
    Kr = taps_ref.shape[0]
    halo = (Kr - 1) // 2

    # ---- depthwise residual conv, lane-dense on the merged (Np, C) slab ----
    # zero only the halo strips, then stage v once into the padded scratch.
    vpad_ref[0:halo, :] = jnp.zeros((halo, C), jnp.float32)
    vpad_ref[halo + Np:, :] = jnp.zeros((halo, C), jnp.float32)
    vpad_ref[halo:halo + Np, :] = v_ref[0].astype(jnp.float32)

    r0 = taps_ref[0:1, :] * vpad_ref[0:Np, :]
    r1 = taps_ref[1:2, :] * vpad_ref[1:1 + Np, :]
    for t in range(2, Kr):                      # 33 full-width VPU mul-adds
        term = taps_ref[t:t + 1, :] * vpad_ref[t:t + Np, :]
        if t % 2 == 0:
            r0 = r0 + term
        else:
            r1 = r1 + term
    merged_ref[...] = r0 + r1                   # conv residual, head-merged layout

    # ---- constants hoisted out of the head / pinv loops ----
    lane_head = lax.broadcasted_iota(jnp.int32, (M, C), 1) // d
    rr = lax.broadcasted_iota(jnp.int32, (M, M), 0)
    cc = lax.broadcasted_iota(jnp.int32, (M, M), 1)
    eye = (rr == cc).astype(jnp.float32)
    eye7, eye15, eye13 = 7.0 * eye, 15.0 * eye, 13.0 * eye
    init = init_ref[...]                        # (1, 1), broadcast below

    q_all = q_ref[0]                            # (Np, C) f32 merged
    k_all = k_ref[0]
    v_all = v_ref[0]                            # (Np, C) bf16 merged
    ql_all = ql_ref[0]                          # (M, C) f32 merged
    kl_all = kl_ref[0]

    def head_body(h, carry):
        head_cols = lane_head == h              # mask of head h's 16 columns
        kl_h = jnp.where(head_cols, kl_all, 0.0)
        ql_h = jnp.where(head_cols, ql_all, 0.0)

        # logits contract over all 128 lanes; the zeroed columns drop out exactly
        attn1 = _softmax_lastdim(_mm_t(q_all, kl_h))       # (Np, M) f32
        attn3 = _softmax_lastdim(_mm_t(ql_h, k_all))       # (M, Np) f32

        # Moore-Penrose pseudo-inverse of attn2 (Newton-Schulz, kept in f32)
        x2 = a2_ref[h]                                     # (M, M)
        z = jnp.transpose(x2) * init
        for _ in range(pinv_iters):
            xz = _mm(x2, z)
            t = eye7 - xz
            t = eye15 - _mm(xz, t)
            t = eye13 - _mm(xz, t)
            z = 0.25 * _mm(z, t)

        # value path in bf16 (f32 accumulation); mask keeps only head h's columns,
        # so the accumulation into the merged buffer is full-width and unmasked.
        attn1z = _mm(attn1.astype(jnp.bfloat16), z.astype(jnp.bfloat16))   # (Np, M)
        tmp2 = _mm(attn3.astype(jnp.bfloat16), v_all)                      # (M, C)
        tmp2 = jnp.where(head_cols, tmp2, 0.0).astype(jnp.bfloat16)
        contrib = _mm(attn1z.astype(jnp.bfloat16), tmp2)                   # (Np, C)
        merged_ref[...] = merged_ref[...] + contrib
        return carry

    lax.fori_loop(0, heads, head_body, 0)

    # fused head-merge + output projection: ONE lane-dense (Np,C)@(C,C) matmul
    y = _mm(merged_ref[...].astype(jnp.bfloat16), wout_ref[...]) + bout_ref[...]
    out_ref[0] = y.astype(out_ref.dtype)


# ----------------------------------------------------------------------------
# wrapper
# ----------------------------------------------------------------------------
def translayer_pallas(x, params, cfg):
    B, n, C = x.shape
    heads = cfg['heads']
    assert C % heads == 0
    d = C // heads
    m = cfg['num_landmarks']
    iters = cfg['pinv_iterations']
    scale = d ** -0.5

    gamma, beta = params['gamma'], params['beta']
    w_qkv, w_out = params['w_qkv'], params['w_out']
    b_out, res_w = params['b_out'], params['res_w']
    Kr = res_w.shape[1]

    l = -(-n // m)
    n_pad = l * m
    pad = n_pad - n

    vmem_limit = 32 * 1024 * 1024

    # fold the q scale into the q columns of w_qkv (zero runtime cost)
    col_scale = jnp.concatenate([jnp.full((C,), scale, jnp.float32),
                                 jnp.ones((2 * C,), jnp.float32)])
    w_qkv_folded = w_qkv * col_scale[None, :]

    # left-pad the sequence once; pad rows are zero-masked post-LN in Kernel A
    x_pad = jnp.pad(x, ((0, 0), (pad, 0), (0, 0))) if pad > 0 else x

    # ---- Kernel A: fused LayerNorm + QKV projection ------------------------
    kernel_a = functools.partial(ln_qkv_kernel, pad=pad)
    q_m, k_m, v_m = pl.pallas_call(
        kernel_a,
        out_shape=[jax.ShapeDtypeStruct((B, n_pad, C), jnp.float32)] * 3,
        grid_spec=pltpu.PrefetchScalarGridSpec(
            num_scalar_prefetch=0,
            grid=(B,),
            in_specs=[
                pl.BlockSpec((1, n_pad, C), lambda b: (b, 0, 0)),
                pl.BlockSpec((1, C), lambda b: (0, 0)),
                pl.BlockSpec((1, C), lambda b: (0, 0)),
                pl.BlockSpec((C, 3 * C), lambda b: (0, 0)),
            ],
            out_specs=[pl.BlockSpec((1, n_pad, C), lambda b: (b, 0, 0))] * 3,
        ),
        compiler_params=pltpu.CompilerParams(
            dimension_semantics=("parallel",),
            vmem_limit_bytes=vmem_limit),
    )(x_pad, gamma.reshape(1, C), beta.reshape(1, C), w_qkv_folded)

    # ---- tiny wrapper math: landmarks, landmark softmax, global pinv init ----
    # NOTE: the landmark means intentionally include the left zero-pad rows in
    # the first group -- this matches the no-mask torch path.
    ql_m = q_m.reshape(B, m, l, C).mean(axis=2)          # (B, m, C) merged
    kl_m = k_m.reshape(B, m, l, C).mean(axis=2)
    ql_h = ql_m.reshape(B, m, heads, d).transpose(0, 2, 1, 3)
    kl_h = kl_m.reshape(B, m, heads, d).transpose(0, 2, 1, 3)
    sim2 = jnp.einsum('bhid,bhjd->bhij', ql_h, kl_h,
                      precision=lax.Precision.HIGHEST)
    attn2 = jax.nn.softmax(sim2, axis=-1)
    a2abs = jnp.abs(attn2)
    # torch normalises by a GLOBAL (batch+head) max -> cross-grid reduction,
    # so it stays in the wrapper and is shipped as a (1,1) scalar.
    init = (1.0 / (jnp.max(jnp.sum(a2abs, axis=-1)) *
                   jnp.max(jnp.sum(a2abs, axis=-2)))).reshape(1, 1)
    init = init.astype(jnp.float32)

    # lane-dense conv taps: merged column c belongs to head c // d
    taps = jnp.repeat(res_w.T, d, axis=1).astype(jnp.float32)       # (Kr, C)

    # ---- Kernel B: Nystrom core + residual conv + fused output projection ---
    kernel_b = functools.partial(nystrom_attn_kernel, heads=heads,
                                 pinv_iters=iters)
    y = pl.pallas_call(
        kernel_b,
        out_shape=jax.ShapeDtypeStruct((B, n_pad, C), jnp.float32),
        grid_spec=pltpu.PrefetchScalarGridSpec(
            num_scalar_prefetch=0,
            grid=(B,),
            in_specs=[
                pl.BlockSpec((1, n_pad, C), lambda b: (b, 0, 0)),    # q merged f32
                pl.BlockSpec((1, n_pad, C), lambda b: (b, 0, 0)),    # k merged f32
                pl.BlockSpec((1, n_pad, C), lambda b: (b, 0, 0)),    # v merged bf16
                pl.BlockSpec((1, m, C), lambda b: (b, 0, 0)),        # q landmarks
                pl.BlockSpec((1, m, C), lambda b: (b, 0, 0)),        # k landmarks
                pl.BlockSpec((heads, m, m), lambda b: (b, 0, 0)),    # attn2 per head
                pl.BlockSpec((1, 1), lambda b: (0, 0)),              # pinv init scalar
                pl.BlockSpec((Kr, C), lambda b: (0, 0)),             # conv taps
                pl.BlockSpec((C, C), lambda b: (0, 0)),              # w_out (bf16)
                pl.BlockSpec((1, C), lambda b: (0, 0)),              # b_out
            ],
            out_specs=pl.BlockSpec((1, n_pad, C), lambda b: (b, 0, 0)),
            scratch_shapes=[
                pltpu.VMEM((n_pad + Kr - 1, C), jnp.float32),        # v + conv halo
                pltpu.VMEM((n_pad, C), jnp.float32),                 # merged accum
            ],
        ),
        compiler_params=pltpu.CompilerParams(
            dimension_semantics=("parallel",),
            vmem_limit_bytes=vmem_limit),
    )(q_m, k_m, v_m.astype(jnp.bfloat16), ql_m, kl_m,
      attn2.reshape(B * heads, m, m),
      init, taps, w_out.astype(jnp.bfloat16), b_out.reshape(1, C))

    # residual: x + attn(norm(x)) on the last n tokens (drop the left padding)
    return x + y[:, n_pad - n:, :]


# ----------------------------------------------------------------------------
# deterministic synthetic parameters
# ----------------------------------------------------------------------------
def make_params(C, heads, res_kernel, key):
    ks = jax.random.split(key, 6)
    gamma = 1.0 + 0.1 * jax.random.normal(ks[0], (C,), jnp.float32)
    beta = 0.1 * jax.random.normal(ks[1], (C,), jnp.float32)
    w_qkv = (3.0 / (C ** 0.5)) * jax.random.normal(ks[2], (C, 3 * C), jnp.float32)
    w_out = (1.0 / (C ** 0.5)) * jax.random.normal(ks[3], (C, C), jnp.float32)
    b_out = 0.02 * jax.random.normal(ks[4], (C,), jnp.float32)
    res_w = 0.1 * jax.random.normal(ks[5], (heads, res_kernel), jnp.float32)
    return dict(gamma=gamma, beta=beta, w_qkv=w_qkv, w_out=w_out,
                b_out=b_out, res_w=res_w)


# ----------------------------------------------------------------------------
# pure-JAX reference (faithful to the PyTorch TransLayer / NystromAttention)
# ----------------------------------------------------------------------------
def translayer_reference(x, params, cfg):
    B, n, C = x.shape
    heads = cfg['heads']
    d = C // heads
    m = cfg['num_landmarks']
    iters = cfg['pinv_iterations']
    scale = d ** -0.5
    hp = lax.Precision.HIGHEST

    gamma, beta = params['gamma'], params['beta']
    w_qkv, w_out = params['w_qkv'], params['w_out']
    b_out, res_w = params['b_out'], params['res_w']

    # LayerNorm (eps=1e-5, biased variance)
    mu = jnp.mean(x, axis=-1, keepdims=True)
    var = jnp.mean((x - mu) ** 2, axis=-1, keepdims=True)
    xn = (x - mu) / jnp.sqrt(var + 1e-5) * gamma + beta

    # pad so the sequence divides evenly into m landmarks (left pad, zeros)
    l = -(-n // m)
    n_pad = l * m
    if n_pad != n:
        xn = jnp.pad(xn, ((0, 0), (n_pad - n, 0), (0, 0)))

    qkv = jnp.einsum('bnc,cf->bnf', xn, w_qkv, precision=hp)
    q, k, v = jnp.split(qkv, 3, axis=-1)
    q, k, v = (t.reshape(B, n_pad, heads, d).transpose(0, 2, 1, 3)
               for t in (q, k, v))
    q = q * scale

    q_l = q.reshape(B, heads, m, l, d).mean(axis=3)
    k_l = k.reshape(B, heads, m, l, d).mean(axis=3)

    sim = lambda a, b: jnp.einsum('bhid,bhjd->bhij', a, b, precision=hp)
    attn1 = jax.nn.softmax(sim(q, k_l), axis=-1)
    attn2 = jax.nn.softmax(sim(q_l, k_l), axis=-1)
    attn3 = jax.nn.softmax(sim(q_l, k), axis=-1)

    # Moore-Penrose iterative pinv (global max normalisation, as in torch)
    mm = lambda a, b: jnp.einsum('bhij,bhjk->bhik', a, b, precision=hp)
    a2 = jnp.abs(attn2)
    z = jnp.swapaxes(attn2, -1, -2) / (jnp.max(jnp.sum(a2, -1)) *
                                       jnp.max(jnp.sum(a2, -2)))
    eye = jnp.eye(m, dtype=jnp.float32)
    for _ in range(iters):
        xz = mm(attn2, z)
        z = 0.25 * mm(z, 13.0 * eye - mm(xz, 15.0 * eye - mm(xz, 7.0 * eye - xz)))

    out = mm(mm(attn1, z), mm(attn3, v))

    # depthwise residual conv (kernel Kr along the sequence, no bias)
    Kr = res_w.shape[1]
    halo = (Kr - 1) // 2
    vp = jnp.pad(v, ((0, 0), (0, 0), (halo, halo), (0, 0)))
    res = jnp.zeros_like(v)
    for t in range(Kr):
        res = res + res_w[None, :, t, None, None] * vp[:, :, t:t + n_pad, :]
    out = out + res

    # merge heads + output projection (dropout p=0.1 is identity in eval)
    out = out.transpose(0, 2, 1, 3).reshape(B, n_pad, heads * d)
    out = jnp.einsum('bnf,fc->bnc', out, w_out, precision=hp) + b_out
    return x + out[:, n_pad - n:, :]


if __name__ == "__main__":
    # small shapes consistent with the module: dim=128 -> heads=8, dim_head=16,
    # num_landmarks=64, pinv_iterations=6; n=197 exercises the landmark padding.
    B, n, C = 2, 197, 128
    cfg = dict(heads=8, num_landmarks=C // 2, pinv_iterations=6)

    key = jax.random.PRNGKey(0)
    kx, kp = jax.random.split(key)
    x = jax.random.normal(kx, (B, n, C), jnp.float32)
    params = make_params(C, cfg['heads'], 33, kp)

    out = translayer_pallas(x, params, cfg)
    out = jax.block_until_ready(out)

    ref = translayer_reference(x, params, cfg)
    assert out.shape == (B, n, C)
    max_err = float(jnp.max(jnp.abs(out - ref)))
    ref_max = float(jnp.max(jnp.abs(ref)))
    assert max_err <= 2e-2 * ref_max + 1e-3, (max_err, ref_max)

    print("KERNEL_OK")
</pallas_src>

<mosaic_0001>
module attributes {stable_mosaic.version = 11 : i64} {
  func.func @ln_qkv_kernel(%arg0: i32, %arg1: memref<1x256x128xf32, #tpu.memory_space<vmem>>, %arg2: memref<1x128xf32, #tpu.memory_space<vmem>>, %arg3: memref<1x128xf32, #tpu.memory_space<vmem>>, %arg4: memref<128x384xf32, #tpu.memory_space<vmem>>, %arg5: memref<1x256x128xf32, #tpu.memory_space<vmem>>, %arg6: memref<1x256x128xf32, #tpu.memory_space<vmem>>, %arg7: memref<1x256x128xf32, #tpu.memory_space<vmem>>) attributes {dimension_semantics = [#tpu.dimension_semantics<parallel>], iteration_bounds = array<i64: 2>, scalar_prefetch = 0 : i64, scratch_operands = 0 : i64, tpu.core_type = #tpu.core_type<tc>, window_params = [{transform_indices = @transform_0, window_bounds = array<i64: 1, 256, 128>}, {pipeline_mode = #tpu.pipeline_mode<synchronous>, transform_indices = @transform_1, window_bounds = array<i64: 1, 128>}, {pipeline_mode = #tpu.pipeline_mode<synchronous>, transform_indices = @transform_2, window_bounds = array<i64: 1, 128>}, {pipeline_mode = #tpu.pipeline_mode<synchronous>, transform_indices = @transform_3, window_bounds = array<i64: 128, 384>}, {transform_indices = @transform_4, window_bounds = array<i64: 1, 256, 128>}, {transform_indices = @transform_5, window_bounds = array<i64: 1, 256, 128>}, {transform_indices = @transform_6, window_bounds = array<i64: 1, 256, 128>}]} {
    %c0 = arith.constant 0 : index
    %c0_0 = arith.constant 0 : index
    %c0_1 = arith.constant 0 : index
    %0 = vector.load %arg1[%c0, %c0_0, %c0_1] : memref<1x256x128xf32, #tpu.memory_space<vmem>>, vector<1x256x128xf32>
    %1 = vector.shape_cast %0 : vector<1x256x128xf32> to vector<256x128xf32>
    %cst = arith.constant dense<0.000000e+00> : vector<256xf32>
    %2 = vector.multi_reduction <add>, %1, %cst [1] : vector<256x128xf32> to vector<256xf32>
    %3 = vector.shape_cast %2 : vector<256xf32> to vector<256x1xf32>
    %cst_2 = arith.constant 1.280000e+02 : f32
    %4 = vector.broadcast %cst_2 : f32 to vector<256x1xf32>
    %5 = arith.divf %3, %4 : vector<256x1xf32>
    %6 = vector.broadcast %5 : vector<256x1xf32> to vector<256x128xf32>
    %7 = arith.subf %1, %6 : vector<256x128xf32>
    %8 = arith.mulf %7, %7 : vector<256x128xf32>
    %cst_3 = arith.constant dense<0.000000e+00> : vector<256xf32>
    %9 = vector.multi_reduction <add>, %8, %cst_3 [1] : vector<256x128xf32> to vector<256xf32>
    %10 = vector.shape_cast %9 : vector<256xf32> to vector<256x1xf32>
    %cst_4 = arith.constant 1.280000e+02 : f32
    %11 = vector.broadcast %cst_4 : f32 to vector<256x1xf32>
    %12 = arith.divf %10, %11 : vector<256x1xf32>
    %cst_5 = arith.constant 9.99999974E-6 : f32
    %13 = vector.broadcast %cst_5 : f32 to vector<256x1xf32>
    %14 = arith.addf %12, %13 : vector<256x1xf32>
    %15 = math.rsqrt %14 : vector<256x1xf32>
    %16 = vector.broadcast %15 : vector<256x1xf32> to vector<256x128xf32>
    %17 = arith.mulf %7, %16 : vector<256x128xf32>
    %c0_6 = arith.constant 0 : index
    %c0_7 = arith.constant 0 : index
    %18 = vector.load %arg2[%c0_6, %c0_7] : memref<1x128xf32, #tpu.memory_space<vmem>>, vector<1x128xf32>
    %19 = vector.broadcast %18 : vector<1x128xf32> to vector<256x128xf32>
    %20 = arith.mulf %17, %19 : vector<256x128xf32>
    %c0_8 = arith.constant 0 : index
    %c0_9 = arith.constant 0 : index
    %21 = vector.load %arg3[%c0_8, %c0_9] : memref<1x128xf32, #tpu.memory_space<vmem>>, vector<1x128xf32>
    %22 = vector.broadcast %21 : vector<1x128xf32> to vector<256x128xf32>
    %23 = arith.addf %20, %22 : vector<256x128xf32>
    %24 = tpu.iota {dimensions = array<i32: 0>} : vector<256x1xi32>
    %c59_i32 = arith.constant 59 : i32
    %25 = vector.broadcast %c59_i32 : i32 to vector<256x1xi32>
    %26 = arith.cmpi sge, %24, %25 : vector<256x1xi32>
    %cst_10 = arith.constant 0.000000e+00 : f32
    %27 = vector.shape_cast %26 : vector<256x1xi1> to vector<256x1xi1>
    %28 = vector.broadcast %27 : vector<256x1xi1> to vector<256x128xi1>
    %29 = vector.broadcast %cst_10 : f32 to vector<256x128xf32>
    %30 = arith.select %28, %23, %29 : vector<256x128xi1>, vector<256x128xf32>
    %c0_11 = arith.constant 0 : index
    %c0_12 = arith.constant 0 : index
    %31 = vector.load %arg4[%c0_11, %c0_12] : memref<128x384xf32, #tpu.memory_space<vmem>>, vector<128x384xf32>
    %cst_13 = arith.constant dense<0.000000e+00> : vector<256x384xf32>
    %32 = tpu.matmul %30, %31, %cst_13 {dimension_numbers = #tpu.dot_dimension_numbers<[1], [0], [0], [1], [0, 0, 1, 1], [], []>} : vector<256x128xf32>, vector<128x384xf32>, vector<256x384xf32> -> vector<256x384xf32>
    %33 = vector.extract_strided_slice %32 {offsets = [0, 0], sizes = [256, 128], strides = [1, 1]} : vector<256x384xf32> to vector<256x128xf32>
    %c0_14 = arith.constant 0 : index
    %c0_15 = arith.constant 0 : index
    %c0_16 = arith.constant 0 : index
    %34 = vector.load %arg5[%c0_14, %c0_15, %c0_16] : memref<1x256x128xf32, #tpu.memory_space<vmem>>, vector<1x256x128xf32>
    %35 = vector.shape_cast %34 : vector<1x256x128xf32> to vector<256x128xf32>
    %36 = vector.shape_cast %33 : vector<256x128xf32> to vector<1x256x128xf32>
    tpu.vector_store %arg5[%c0_14, %c0_15, %c0_16], %36 {strides = array<i32>} : memref<1x256x128xf32, #tpu.memory_space<vmem>>, vector<1x256x128xf32>,
    %37 = vector.extract_strided_slice %32 {offsets = [0, 128], sizes = [256, 128], strides = [1, 1]} : vector<256x384xf32> to vector<256x128xf32>
    %c0_17 = arith.constant 0 : index
    %c0_18 = arith.constant 0 : index
    %c0_19 = arith.constant 0 : index
    %38 = vector.load %arg6[%c0_17, %c0_18, %c0_19] : memref<1x256x128xf32, #tpu.memory_space<vmem>>, vector<1x256x128xf32>
    %39 = vector.shape_cast %38 : vector<1x256x128xf32> to vector<256x128xf32>
    %40 = vector.shape_cast %37 : vector<256x128xf32> to vector<1x256x128xf32>
    tpu.vector_store %arg6[%c0_17, %c0_18, %c0_19], %40 {strides = array<i32>} : memref<1x256x128xf32, #tpu.memory_space<vmem>>, vector<1x256x128xf32>,
    %41 = vector.extract_strided_slice %32 {offsets = [0, 256], sizes = [256, 128], strides = [1, 1]} : vector<256x384xf32> to vector<256x128xf32>
    %c0_20 = arith.constant 0 : index
    %c0_21 = arith.constant 0 : index
    %c0_22 = arith.constant 0 : index
    %42 = vector.load %arg7[%c0_20, %c0_21, %c0_22] : memref<1x256x128xf32, #tpu.memory_space<vmem>>, vector<1x256x128xf32>
    %43 = vector.shape_cast %42 : vector<1x256x128xf32> to vector<256x128xf32>
    %44 = vector.shape_cast %41 : vector<256x128xf32> to vector<1x256x128xf32>
    tpu.vector_store %arg7[%c0_20, %c0_21, %c0_22], %44 {strides = array<i32>} : memref<1x256x128xf32, #tpu.memory_space<vmem>>, vector<1x256x128xf32>,
    return
  }
  func.func @transform_0(%arg0: i32) -> (i32, i32, i32) {
    %c0_i32 = arith.constant 0 : i32
    %c0_i32_0 = arith.constant 0 : i32
    %c0_i32_1 = arith.constant 0 : i32
    return %arg0, %c0_i32, %c0_i32_0 : i32, i32, i32
  }
  func.func @transform_1(%arg0: i32) -> (i32, i32) {
    %c0_i32 = arith.constant 0 : i32
    %c0_i32_0 = arith.constant 0 : i32
    %c0_i32_1 = arith.constant 0 : i32
    return %c0_i32, %c0_i32_0 : i32, i32
  }
  func.func @transform_2(%arg0: i32) -> (i32, i32) {
    %c0_i32 = arith.constant 0 : i32
    %c0_i32_0 = arith.constant 0 : i32
    %c0_i32_1 = arith.constant 0 : i32
    return %c0_i32, %c0_i32_0 : i32, i32
  }
  func.func @transform_3(%arg0: i32) -> (i32, i32) {
    %c0_i32 = arith.constant 0 : i32
    %c0_i32_0 = arith.constant 0 : i32
    %c0_i32_1 = arith.constant 0 : i32
    return %c0_i32, %c0_i32_0 : i32, i32
  }
  func.func @transform_4(%arg0: i32) -> (i32, i32, i32) {
    %c0_i32 = arith.constant 0 : i32
    %c0_i32_0 = arith.constant 0 : i32
    %c0_i32_1 = arith.constant 0 : i32
    return %arg0, %c0_i32, %c0_i32_0 : i32, i32, i32
  }
  func.func @transform_5(%arg0: i32) -> (i32, i32, i32) {
    %c0_i32 = arith.constant 0 : i32
    %c0_i32_0 = arith.constant 0 : i32
    %c0_i32_1 = arith.constant 0 : i32
    return %arg0, %c0_i32, %c0_i32_0 : i32, i32, i32
  }
  func.func @transform_6(%arg0: i32) -> (i32, i32, i32) {
    %c0_i32 = arith.constant 0 : i32
    %c0_i32_0 = arith.constant 0 : i32
    %c0_i32_1 = arith.constant 0 : i32
    return %arg0, %c0_i32, %c0_i32_0 : i32, i32, i32
  }
}

</mosaic_0001>

<llo_original>
// kernel: tpu_custom_call.1
$region0: #{tpu_custom_call.1}
  #allocation0 [shape = 'u32[]', space=smem, size = 0x4, offset = 0x4, fixed_abs, tag = 'smem constant byte address 0x4 - core index']
  #allocation1 [shape = 'u32[72,128]{1,0:T(1,128)}', space=vmem, size = 0x9000, scoped, tag = 'internal scratch']
  %s0 = inlined_call_operand.hbm [shape: f32[2,256,128], index: 0, kind: input, shape index: {}]
  %s1 = inlined_call_operand.hbm [shape: f32[1,128], index: 1, kind: input, shape index: {}]
  %s2 = inlined_call_operand.vmem [shape: f32[1,128], index: 2, kind: input, shape index: {}]
  %s3 = inlined_call_operand.hbm [shape: f32[128,384], index: 3, kind: input, shape index: {}]
  %s4 = inlined_call_operand.hbm [shape: f32[2,256,128], index: 4, kind: output, shape index: {0}]
  %s5 = inlined_call_operand.hbm [shape: f32[2,256,128], index: 5, kind: output, shape index: {1}]
  %s6 = inlined_call_operand.hbm [shape: f32[2,256,128], index: 6, kind: output, shape index: {2}]
  %7 = xla_tuple %s4, %s5, %s6
  %s8 = sld [smem:[#allocation0]]
  $region77: #{tpu_custom_call.1} parent=0
    _
  %s10 = ssub.s32 1, %s8
  %s11 = scalar_select 0, %s10, %s8
  $region1: #{tpu_custom_call.1} parent=0
    #allocation2 [shape = 'u8[262144]{0}', space=vmem, size = 0x40000, scoped, tag = 'input window, operand 0']
    #allocation3 [shape = 's32[2]{0}', space=sflag, size = 0x8, scoped, tag = 'scoped memory for tpu_custom_call.1']
    #allocation4 [shape = 's32[2]{0}', space=sflag, size = 0x8, scoped, tag = 'scoped memory for tpu_custom_call.1']
    #allocation5 [shape = 'u8[512]{0}', space=vmem, size = 0x400, scoped, tag = 'input window, operand 1, single buffered']
    #allocation6 [shape = 's32[1]{0}', space=sflag, size = 0x4, scoped, tag = 'scoped memory for tpu_custom_call.1']
    #allocation7 [shape = 'u8[196608]{0}', space=vmem, size = 0x30000, scoped, tag = 'input window, operand 3, single buffered']
    #allocation8 [shape = 'u8[262144]{0}', space=vmem, size = 0x40000, scoped, tag = 'output window, operand 0']
    #allocation9 [shape = 'u8[262144]{0}', space=vmem, size = 0x40000, scoped, tag = 'output window, operand 1']
    #allocation10 [shape = 's32[2]{0}', space=sflag, size = 0x8, scoped, tag = 'scoped memory for tpu_custom_call.1']
    #allocation11 [shape = 'u8[262144]{0}', space=vmem, size = 0x40000, scoped, tag = 'output window, operand 2']
    %12 = vsyncpa [#allocation3], 0
    %s13 = scalar_lea.sflag [#allocation3], 1
    %14 = vsyncpa %s13, 0
    %15 = vsyncpa [#allocation6], 0
    %16 = vsyncpa [#allocation4], 0
    %s17 = scalar_lea.sflag [#allocation4], 1
    %18 = vsyncpa %s17, 0
    %19 = vsyncpa [#allocation10], 0
    %s20 = scalar_lea.sflag [#allocation10], 1
    %21 = vsyncpa %s20, 0
    loop: start=0, step=1, limit=4
    $region2: #{tpu_custom_call.1} parent=1 // loop_pre_header
      _
    $region3: #{tpu_custom_call.1} parent=1 // loop_header
      %s23 = sphi 0, %s27
      %p24 = scmp.ge.s32.totalorder %s23, 4
      %s33 = sphi 0, %s35
      %s36 = sphi 0, %s33
      %s37 = sphi 0, %s36
      %s53 = sphi 0, %s37
      %s57 = sphi 0, %s57
      %s59 = sphi 0, %s57
      %s60 = sphi 0, %s59
      %s74 = sphi 0, %s60
      %s78 = sphi 0, %s78
      %s80 = sphi 0, %s78
      %s81 = sphi 0, %s80
      %s95 = sphi 0, %s81
      %s99 = sphi 0, %s99
      %s101 = sphi 0, %s99
      %s102 = sphi 0, %s101
      %s116 = sphi 0, %s102
      %s122 = sphi 0, %s124
      %s125 = sphi 0, %s122
      %s126 = sphi 0, %s125
      %s142 = sphi 0, %s126
      %s148 = sphi 0, %s150
      %s151 = sphi 0, %s148
      %s152 = sphi 0, %s151
      %s168 = sphi 0, %s152
      %s174 = sphi 0, %s176
      %s177 = sphi 0, %s174
      %s178 = sphi 0, %s177
      %s194 = sphi 0, %s178
    $region4: #{tpu_custom_call.1} parent=1 // loop_header_branch
      %26 = sbr.rel (%p24) target = $region8
    $region5: #{tpu_custom_call.1} parent=1 // loop_body
      %s28 = ssub.s32 %s23, 1
      %s29 = ssub.s32 %s23, 2
      %s30 = sadd.s32 %s23, 1
      %s31 = ssub.s32 %s23, %s30
      %p32 = scmp.eq.s32.totalorder %s31, 0
      %s34 = sadd.s32 %s33, 1
      %s35 = scalar_select %p32, %s33, %s34
      %p38 = pneg %p32
      %p39 = scmp.eq.s32.totalorder %s23, 1
      %p40 = por %p38, %p39
      %p41 = scmp.ne.s32.totalorder %s33, %s36
      %p42 = scmp.eq.s32.totalorder %s23, 0
      %p43 = por %p41, %p42
      %p44 = scmp.ne.s32.totalorder %s33, %s36
      %p45 = scmp.eq.s32.totalorder %s28, 1
      %p46 = por %p44, %p45
      %p47 = scmp.ne.s32.totalorder %s36, %s37
      %p48 = scmp.eq.s32.totalorder %s28, 0
      %p49 = por %p47, %p48
      %p50 = scmp.ne.s32.totalorder %s36, %s37
      %p51 = scmp.eq.s32.totalorder %s29, 1
      %p52 = por %p50, %p51
      %p54 = scmp.ne.s32.totalorder %s37, %s53
      %p55 = scmp.eq.s32.totalorder %s29, 0
      %p56 = por %p54, %p55
      %s58 = sadd.s32 %s57, 1
      %p61 = scmp.eq.s32.totalorder %s23, 1
      %p62 = scmp.ne.s32.totalorder %s57, %s59
      %p63 = scmp.eq.s32.totalorder %s23, 0
      %p64 = por %p62, %p63
      %p65 = scmp.ne.s32.totalorder %s57, %s59
      %p66 = scmp.eq.s32.totalorder %s28, 1
      %p67 = por %p65, %p66
      %p68 = scmp.ne.s32.totalorder %s59, %s60
      %p69 = scmp.eq.s32.totalorder %s28, 0
      %p70 = por %p68, %p69
      %p71 = scmp.ne.s32.totalorder %s59, %s60
      %p72 = scmp.eq.s32.totalorder %s29, 1
      %p73 = por %p71, %p72
      %p75 = scmp.ne.s32.totalorder %s60, %s74
      %p76 = scmp.eq.s32.totalorder %s29, 0
      %p77 = por %p75, %p76
      %s79 = sadd.s32 %s78, 1
      %p82 = scmp.eq.s32.totalorder %s23, 1
      %p83 = scmp.ne.s32.totalorder %s78, %s80
      %p84 = scmp.eq.s32.totalorder %s23, 0
      %p85 = por %p83, %p84
      %p86 = scmp.ne.s32.totalorder %s78, %s80
      %p87 = scmp.eq.s32.totalorder %s28, 1
      %p88 = por %p86, %p87
      %p89 = scmp.ne.s32.totalorder %s80, %s81
      %p90 = scmp.eq.s32.totalorder %s28, 0
      %p91 = por %p89, %p90
      %p92 = scmp.ne.s32.totalorder %s80, %s81
      %p93 = scmp.eq.s32.totalorder %s29, 1
      %p94 = por %p92, %p93
      %p96 = scmp.ne.s32.totalorder %s81, %s95
      %p97 = scmp.eq.s32.totalorder %s29, 0
      %p98 = por %p96, %p97
      %s100 = sadd.s32 %s99, 1
      %p103 = scmp.eq.s32.totalorder %s23, 1
      %p104 = scmp.ne.s32.totalorder %s99, %s101
      %p105 = scmp.eq.s32.totalorder %s23, 0
      %p106 = por %p104, %p105
      %p107 = scmp.ne.s32.totalorder %s99, %s101
      %p108 = scmp.eq.s32.totalorder %s28, 1
      %p109 = por %p107, %p108
      %p110 = scmp.ne.s32.totalorder %s101, %s102
      %p111 = scmp.eq.s32.totalorder %s28, 0
      %p112 = por %p110, %p111
      %p113 = scmp.ne.s32.totalorder %s101, %s102
      %p114 = scmp.eq.s32.totalorder %s29, 1
      %p115 = por %p113, %p114
      %p117 = scmp.ne.s32.totalorder %s102, %s116
      %p118 = scmp.eq.s32.totalorder %s29, 0
      %p119 = por %p117, %p118
      %s120 = ssub.s32 %s23, %s30
      %p121 = scmp.eq.s32.totalorder %s120, 0
      %s123 = sadd.s32 %s122, 1
      %s124 = scalar_select %p121, %s122, %s123
      %p127 = pneg %p121
      %p128 = scmp.eq.s32.totalorder %s23, 1
      %p129 = por %p127, %p128
      %p130 = scmp.ne.s32.totalorder %s122, %s125
      %p131 = scmp.eq.s32.totalorder %s23, 0
      %p132 = por %p130, %p131
      %p133 = scmp.ne.s32.totalorder %s122, %s125
      %p134 = scmp.eq.s32.totalorder %s28, 1
      %p135 = por %p133, %p134
      %p136 = scmp.ne.s32.totalorder %s125, %s126
      %p137 = scmp.eq.s32.totalorder %s28, 0
      %p138 = por %p136, %p137
      %p139 = scmp.ne.s32.totalorder %s125, %s126
      %p140 = scmp.eq.s32.totalorder %s29, 1
      %p141 = por %p139, %p140
      %p143 = scmp.ne.s32.totalorder %s126, %s142
      %p144 = scmp.eq.s32.totalorder %s29, 0
      %p145 = por %p143, %p144
      %s146 = ssub.s32 %s23, %s30
      %p147 = scmp.eq.s32.totalorder %s146, 0
      %s149 = sadd.s32 %s148, 1
      %s150 = scalar_select %p147, %s148, %s149
      %p153 = pneg %p147
      %p154 = scmp.eq.s32.totalorder %s23, 1
      %p155 = por %p153, %p154
      %p156 = scmp.ne.s32.totalorder %s148, %s151
      %p157 = scmp.eq.s32.totalorder %s23, 0
      %p158 = por %p156, %p157
      %p159 = scmp.ne.s32.totalorder %s148, %s151
      %p160 = scmp.eq.s32.totalorder %s28, 1
      %p161 = por %p159, %p160
      %p162 = scmp.ne.s32.totalorder %s151, %s152
      %p163 = scmp.eq.s32.totalorder %s28, 0
      %p164 = por %p162, %p163
      %p165 = scmp.ne.s32.totalorder %s151, %s152
      %p166 = scmp.eq.s32.totalorder %s29, 1
      %p167 = por %p165, %p166
      %p169 = scmp.ne.s32.totalorder %s152, %s168
      %p170 = scmp.eq.s32.totalorder %s29, 0
      %p171 = por %p169, %p170
      %s172 = ssub.s32 %s23, %s30
      %p173 = scmp.eq.s32.totalorder %s172, 0
      %s175 = sadd.s32 %s174, 1
      %s176 = scalar_select %p173, %s174, %s175
      %p179 = pneg %p173
      %p180 = scmp.eq.s32.totalorder %s23, 1
      %p181 = por %p179, %p180
      %p182 = scmp.ne.s32.totalorder %s174, %s177
      %p183 = scmp.eq.s32.totalorder %s23, 0
      %p184 = por %p182, %p183
      %p185 = scmp.ne.s32.totalorder %s174, %s177
      %p186 = scmp.eq.s32.totalorder %s28, 1
      %p187 = por %p185, %p186
      %p188 = scmp.ne.s32.totalorder %s177, %s178
      %p189 = scmp.eq.s32.totalorder %s28, 0
      %p190 = por %p188, %p189
      %p191 = scmp.ne.s32.totalorder %s177, %s178
      %p192 = scmp.eq.s32.totalorder %s29, 1
      %p193 = por %p191, %p192
      %p195 = scmp.ne.s32.totalorder %s178, %s194
      %p196 = scmp.eq.s32.totalorder %s29, 0
      %p197 = por %p195, %p196
      %p198 = scmp.le.s32.totalorder 1, %s23
      %p199 = scmp.lt.s32.totalorder %s23, 3
      %p200 = pnand %p198, %p199
      %p201 = pneg %p200
      // Predicated region
      $region9: #{tpu_custom_call.1} parent=5 // pred_check
        _
      $region10: #{tpu_custom_call.1} parent=5 // pred_check_branch
        %203 = sbr.rel (%p200) target = $region12
      $region11: #{tpu_custom_call.1} parent=5 // pred_region
        %s204 = ssub.s32 %s23, 1
        // Predicated region
        $region13: #{tpu_custom_call.1} parent=11 // pred_check
          %p205 = pneg %p70
        $region14: #{tpu_custom_call.1} parent=11 // pred_check_branch
          %207 = sbr.rel (%p205) target = $region16
        $region15: #{tpu_custom_call.1} parent=11 // pred_region
          %209 = vsyncadd [#allocation6], 0
          %s211 = sshll.u32 %s1, 4
          %s212 = int_to_ptr.hbm [resolvable:$true] %s211
          %s213 = sshll.u32 [#allocation5], 4
          %s214 = int_to_ptr.vmem [resolvable:$true] %s213
          %216 = dma.hbm_to_vmem [thread:$0]  %s212, 16, %s214, [#allocation6]
        $region16: #{tpu_custom_call.1} parent=11 // pred_fallthru
          _
        // Predicated region
        $region17: #{tpu_custom_call.1} parent=11 // pred_check
          %p217 = pneg %p91
        $region18: #{tpu_custom_call.1} parent=11 // pred_check_branch
          %219 = sbr.rel (%p217) target = $region20
        $region19: #{tpu_custom_call.1} parent=11 // pred_region
          _
        $region20: #{tpu_custom_call.1} parent=11 // pred_fallthru
          _
        // Predicated region
        $region21: #{tpu_custom_call.1} parent=11 // pred_check
          %p220 = pneg %p112
        $region22: #{tpu_custom_call.1} parent=11 // pred_check_branch
          %222 = sbr.rel (%p220) target = $region24
        $region23: #{tpu_custom_call.1} parent=11 // pred_region
          %224 = vsyncadd [#allocation6], 0
          %s225 = sshll.u32 %s3, 4
          %s226 = int_to_ptr.hbm [resolvable:$true] %s225
          %s227 = sshll.u32 [#allocation7], 4
          %s228 = int_to_ptr.vmem [resolvable:$true] %s227
          %233 = dma.hbm_to_vmem [thread:$0]  %s226, 6144, %s228, [#allocation6], 384, 384, 24
        $region24: #{tpu_custom_call.1} parent=11 // pred_fallthru
          _
      $region12: #{tpu_custom_call.1} parent=5 // pred_fallthru
        _
      %p234 = scmp.lt.s32.totalorder %s23, 2
      // Predicated region
      $region25: #{tpu_custom_call.1} parent=5 // pred_check
        %p235 = pneg %p234
      $region26: #{tpu_custom_call.1} parent=5 // pred_check_branch
        %237 = sbr.rel (%p235) target = $region28
      $region27: #{tpu_custom_call.1} parent=5 // pred_region
        // Predicated region
        $region29: #{tpu_custom_call.1} parent=27 // pred_check
          %p238 = pneg %p43
        $region30: #{tpu_custom_call.1} parent=27 // pred_check_branch
          %240 = sbr.rel (%p238) target = $region32
        $region31: #{tpu_custom_call.1} parent=27 // pred_region
          %s241 = sand.u32 %s33, 1
          %s242 = scalar_lea.sflag [#allocation3], %s241
          %s243 = sand.u32 %s33, 1
          %s244 = smul.addr %s243, 256
          %s245 = scalar_lea.vmem [#allocation2], %s244
          %247 = vsyncadd %s242, 0
          %s248 = smul.addr %s23, 32
          %s249 = smul.addr %s248, 8
          %s250 = scalar_lea.hbm %s0, %s249
          %s251 = sshll.u32 %s250, 4
          %s252 = int_to_ptr.hbm [resolvable:$true] %s251
          %s253 = sshll.u32 %s245, 4
          %s254 = int_to_ptr.vmem [resolvable:$true] %s253
          %259 = dma.hbm_to_vmem [thread:$0]  %s252, 4096, %s254, %s242, 128, 128, 8
        $region32: #{tpu_custom_call.1} parent=27 // pred_fallthru
          _
      $region28: #{tpu_custom_call.1} parent=5 // pred_fallthru
        _
      %p260 = scmp.le.s32.totalorder 1, %s23
      %p261 = scmp.lt.s32.totalorder %s23, 3
      %p262 = pnand %p260, %p261
      %p263 = pneg %p262
      // Predicated region
      $region33: #{tpu_custom_call.1} parent=5 // pred_check
        _
      $region34: #{tpu_custom_call.1} parent=5 // pred_check_branch
        %265 = sbr.rel (%p262) target = $region36
      $region35: #{tpu_custom_call.1} parent=5 // pred_region
        %s266 = ssub.s32 %s23, 1
        %s267 = sand.u32 %s36, 1
        %s268 = scalar_lea.sflag [#allocation3], %s267
        %s269 = sand.u32 %s36, 1
        %s270 = smul.addr %s269, 256
        %s271 = scalar_lea.vmem [#allocation2], %s270
        // Predicated region
        $region37: #{tpu_custom_call.1} parent=35 // pred_check
          %p272 = pneg %p49
        $region38: #{tpu_custom_call.1} parent=35 // pred_check_branch
          %274 = sbr.rel (%p272) target = $region40
        $region39: #{tpu_custom_call.1} parent=35 // pred_region
          %276 = dma.done %s268, 4096
        $region40: #{tpu_custom_call.1} parent=35 // pred_fallthru
          _
        // Predicated region
        $region41: #{tpu_custom_call.1} parent=35 // pred_check
          %p277 = pneg %p70
        $region42: #{tpu_custom_call.1} parent=35 // pred_check_branch
          %279 = sbr.rel (%p277) target = $region44
        $region43: #{tpu_custom_call.1} parent=35 // pred_region
          %281 = dma.done [#allocation6], 16
        $region44: #{tpu_custom_call.1} parent=35 // pred_fallthru
          _
        // Predicated region
        $region45: #{tpu_custom_call.1} parent=35 // pred_check
          %p282 = pneg %p112
        $region46: #{tpu_custom_call.1} parent=35 // pred_check_branch
          %284 = sbr.rel (%p282) target = $region48
        $region47: #{tpu_custom_call.1} parent=35 // pred_region
          %286 = dma.done [#allocation6], 6144
        $region48: #{tpu_custom_call.1} parent=35 // pred_fallthru
          _
        %s287 = sand.u32 %s36, 1
        %s288 = scalar_lea.sflag [#allocation3], %s287
        %s289 = sand.u32 %s36, 1
        %s290 = smul.addr %s289, 256
        %s291 = scalar_lea.vmem [#allocation2], %s290
        %p292 = pneg %p49
        %p293 = pneg %p46
        %p294 = pneg %p70
        %p295 = pneg %p67
        %p296 = pneg %p91
        %p297 = pneg %p88
        %p298 = pneg %p112
        %p299 = pneg %p109
        %p300 = pneg %p138
        %p301 = pneg %p135
        %s302 = sand.u32 %s125, 1
        %s303 = scalar_lea.sflag [#allocation4], %s302
        %s304 = sand.u32 %s125, 1
        %s305 = smul.addr %s304, 256
        %s306 = scalar_lea.vmem [#allocation8], %s305
        %p307 = pneg %p164
        %p308 = pneg %p161
        %s309 = sand.u32 %s28, 1
        %s310 = scalar_lea.sflag [#allocation10], %s309
        %s311 = sand.u32 %s151, 1
        %s312 = smul.addr %s311, 256
        %s313 = scalar_lea.vmem [#allocation9], %s312
        %p314 = pneg %p190
        %p315 = pneg %p187
        %s316 = sand.u32 %s28, 1
        %s317 = scalar_lea.sflag [#allocation10], %s316
        %s318 = sand.u32 %s177, 1
        %s319 = smul.addr %s318, 256
        %s320 = scalar_lea.vmem [#allocation11], %s319
        %v321 = vld [vmem:[%s271] sm:$0xff]
        %v322 = vld [vmem:[%s271 + $0x8] sm:$0xff]
        %v323 = vld [vmem:[%s271 + $0x10] sm:$0xff]
        %v324 = vld [vmem:[%s271 + $0x18] sm:$0xff]
        %v325 = vld [vmem:[%s271 + $0x20] sm:$0xff]
        %v326 = vld [vmem:[%s271 + $0x28] sm:$0xff]
        %v327 = vld [vmem:[%s271 + $0x30] sm:$0xff]
        %v328 = vld [vmem:[%s271 + $0x38] sm:$0xff]
        %v329 = vld [vmem:[%s271 + $0x40] sm:$0xff]
        %v330 = vld [vmem:[%s271 + $0x48] sm:$0xff]
        %v331 = vld [vmem:[%s271 + $0x50] sm:$0xff]
        %v332 = vld [vmem:[%s271 + $0x58] sm:$0xff]
        %v333 = vld [vmem:[%s271 + $0x60] sm:$0xff]
        %v334 = vld [vmem:[%s271 + $0x68] sm:$0xff]
        %v335 = vld [vmem:[%s271 + $0x70] sm:$0xff]
        %v336 = vld [vmem:[%s271 + $0x78] sm:$0xff]
        %v337 = vld [vmem:[%s271 + $0x80] sm:$0xff]
        %v338 = vld [vmem:[%s271 + $0x88] sm:$0xff]
        %v339 = vld [vmem:[%s271 + $0x90] sm:$0xff]
        %v340 = vld [vmem:[%s271 + $0x98] sm:$0xff]
        %v341 = vld [vmem:[%s271 + $0xa0] sm:$0xff]
        %v342 = vld [vmem:[%s271 + $0xa8] sm:$0xff]
        %v343 = vld [vmem:[%s271 + $0xb0] sm:$0xff]
        %v344 = vld [vmem:[%s271 + $0xb8] sm:$0xff]
        %v345 = vld [vmem:[%s271 + $0xc0] sm:$0xff]
        %v346 = vld [vmem:[%s271 + $0xc8] sm:$0xff]
        %v347 = vld [vmem:[%s271 + $0xd0] sm:$0xff]
        %v348 = vld [vmem:[%s271 + $0xd8] sm:$0xff]
        %v349 = vld [vmem:[%s271 + $0xe0] sm:$0xff]
        %v350 = vld [vmem:[%s271 + $0xe8] sm:$0xff]
        %v351 = vld [vmem:[%s271 + $0xf0] sm:$0xff]
        %v352 = vld [vmem:[%s271 + $0xf8] sm:$0xff]
        %353 = vadd.xlane.f32.xlu0 %v321
        %v354 = vpop.xlane.xlu0 %353
        %355 = vadd.xlane.f32.xlu0 %v322
        %v356 = vpop.xlane.xlu0 %355
        %357 = vadd.xlane.f32.xlu0 %v323
        %v358 = vpop.xlane.xlu0 %357
        %359 = vadd.xlane.f32.xlu0 %v324
        %v360 = vpop.xlane.xlu0 %359
        %361 = vadd.xlane.f32.xlu0 %v325
        %v362 = vpop.xlane.xlu0 %361
        %363 = vadd.xlane.f32.xlu0 %v326
        %v364 = vpop.xlane.xlu0 %363
        %365 = vadd.xlane.f32.xlu0 %v327
        %v366 = vpop.xlane.xlu0 %365
        %367 = vadd.xlane.f32.xlu0 %v328
        %v368 = vpop.xlane.xlu0 %367
        %369 = vadd.xlane.f32.xlu0 %v329
        %v370 = vpop.xlane.xlu0 %369
        %371 = vadd.xlane.f32.xlu0 %v330
        %v372 = vpop.xlane.xlu0 %371
        %373 = vadd.xlane.f32.xlu0 %v331
        %v374 = vpop.xlane.xlu0 %373
        %375 = vadd.xlane.f32.xlu0 %v332
        %v376 = vpop.xlane.xlu0 %375
        %377 = vadd.xlane.f32.xlu0 %v333
        %v378 = vpop.xlane.xlu0 %377
        %379 = vadd.xlane.f32.xlu0 %v334
        %v380 = vpop.xlane.xlu0 %379
        %381 = vadd.xlane.f32.xlu0 %v335
        %v382 = vpop.xlane.xlu0 %381
        %383 = vadd.xlane.f32.xlu0 %v336
        %v384 = vpop.xlane.xlu0 %383
        %385 = vadd.xlane.f32.xlu0 %v337
        %v386 = vpop.xlane.xlu0 %385
        %387 = vadd.xlane.f32.xlu0 %v338
        %v388 = vpop.xlane.xlu0 %387
        %389 = vadd.xlane.f32.xlu0 %v339
        %v390 = vpop.xlane.xlu0 %389
        %391 = vadd.xlane.f32.xlu0 %v340
        %v392 = vpop.xlane.xlu0 %391
        %393 = vadd.xlane.f32.xlu0 %v341
        %v394 = vpop.xlane.xlu0 %393
        %395 = vadd.xlane.f32.xlu0 %v342
        %v396 = vpop.xlane.xlu0 %395
        %397 = vadd.xlane.f32.xlu0 %v343
        %v398 = vpop.xlane.xlu0 %397
        %399 = vadd.xlane.f32.xlu0 %v344
        %v400 = vpop.xlane.xlu0 %399
        %401 = vadd.xlane.f32.xlu0 %v345
        %v402 = vpop.xlane.xlu0 %401
        %403 = vadd.xlane.f32.xlu0 %v346
        %v404 = vpop.xlane.xlu0 %403
        %405 = vadd.xlane.f32.xlu0 %v347
        %v406 = vpop.xlane.xlu0 %405
        %407 = vadd.xlane.f32.xlu0 %v348
        %v408 = vpop.xlane.xlu0 %407
        %409 = vadd.xlane.f32.xlu0 %v349
        %v410 = vpop.xlane.xlu0 %409
        %411 = vadd.xlane.f32.xlu0 %v350
        %v412 = vpop.xlane.xlu0 %411
        %413 = vadd.xlane.f32.xlu0 %v351
        %v414 = vpop.xlane.xlu0 %413
        %415 = vadd.xlane.f32.xlu0 %v352
        %v416 = vpop.xlane.xlu0 %415
        %v417 = vrcp.pop 128.0
        %v418 = vmul.f32 128.0, %v417
        %v419 = vsub.f32 1.0, %v418
        %v420 = vmul.f32 %v417, %v419
        %v421 = vadd.f32 %v417, %v420
        %vm422 = vweird.f32 %v417
        %v423 = vsel %vm422, %v417, %v421
        %v424 = vmul.f32 %v354, %v423
        %v425 = vmul.f32 %v356, %v423
        %v426 = vmul.f32 %v358, %v423
        %v427 = vmul.f32 %v360, %v423
        %v428 = vmul.f32 %v362, %v423
        %v429 = vmul.f32 %v364, %v423
        %v430 = vmul.f32 %v366, %v423
        %v431 = vmul.f32 %v368, %v423
        %v432 = vmul.f32 %v370, %v423
        %v433 = vmul.f32 %v372, %v423
        %v434 = vmul.f32 %v374, %v423
        %v435 = vmul.f32 %v376, %v423
        %v436 = vmul.f32 %v378, %v423
        %v437 = vmul.f32 %v380, %v423
        %v438 = vmul.f32 %v382, %v423
        %v439 = vmul.f32 %v384, %v423
        %v440 = vmul.f32 %v386, %v423
        %v441 = vmul.f32 %v388, %v423
        %v442 = vmul.f32 %v390, %v423
        %v443 = vmul.f32 %v392, %v423
        %v444 = vmul.f32 %v394, %v423
        %v445 = vmul.f32 %v396, %v423
        %v446 = vmul.f32 %v398, %v423
        %v447 = vmul.f32 %v400, %v423
        %v448 = vmul.f32 %v402, %v423
        %v449 = vmul.f32 %v404, %v423
        %v450 = vmul.f32 %v406, %v423
        %v451 = vmul.f32 %v408, %v423
        %v452 = vmul.f32 %v410, %v423
        %v453 = vmul.f32 %v412, %v423
        %v454 = vmul.f32 %v414, %v423
        %v455 = vmul.f32 %v416, %v423
        %v456 = vsub.f32 %v321, %v424
        %v457 = vsub.f32 %v322, %v425
        %v458 = vsub.f32 %v323, %v426
        %v459 = vsub.f32 %v324, %v427
        %v460 = vsub.f32 %v325, %v428
        %v461 = vsub.f32 %v326, %v429
        %v462 = vsub.f32 %v327, %v430
        %v463 = vsub.f32 %v328, %v431
        %v464 = vsub.f32 %v329, %v432
        %v465 = vsub.f32 %v330, %v433
        %v466 = vsub.f32 %v331, %v434
        %v467 = vsub.f32 %v332, %v435
        %v468 = vsub.f32 %v333, %v436
        %v469 = vsub.f32 %v334, %v437
        %v470 = vsub.f32 %v335, %v438
        %v471 = vsub.f32 %v336, %v439
        %v472 = vsub.f32 %v337, %v440
        %v473 = vsub.f32 %v338, %v441
        %v474 = vsub.f32 %v339, %v442
        %v475 = vsub.f32 %v340, %v443
        %v476 = vsub.f32 %v341, %v444
        %v477 = vsub.f32 %v342, %v445
        %v478 = vsub.f32 %v343, %v446
        %v479 = vsub.f32 %v344, %v447
        %v480 = vsub.f32 %v345, %v448
        %v481 = vsub.f32 %v346, %v449
        %v482 = vsub.f32 %v347, %v450
        %v483 = vsub.f32 %v348, %v451
        %v484 = vsub.f32 %v349, %v452
        %v485 = vsub.f32 %v350, %v453
        %v486 = vsub.f32 %v351, %v454
        %v487 = vsub.f32 %v352, %v455
        %v488 = vmul.f32 %v456, %v456
        %v489 = vmul.f32 %v457, %v457
        %v490 = vmul.f32 %v458, %v458
        %v491 = vmul.f32 %v459, %v459
        %v492 = vmul.f32 %v460, %v460
        %v493 = vmul.f32 %v461, %v461
        %v494 = vmul.f32 %v462, %v462
        %v495 = vmul.f32 %v463, %v463
        %v496 = vmul.f32 %v464, %v464
        %v497 = vmul.f32 %v465, %v465
        %v498 = vmul.f32 %v466, %v466
        %v499 = vmul.f32 %v467, %v467
        %v500 = vmul.f32 %v468, %v468
        %v501 = vmul.f32 %v469, %v469
        %v502 = vmul.f32 %v470, %v470
        %v503 = vmul.f32 %v471, %v471
        %v504 = vmul.f32 %v472, %v472
        %v505 = vmul.f32 %v473, %v473
        %v506 = vmul.f32 %v474, %v474
        %v507 = vmul.f32 %v475, %v475
        %v508 = vmul.f32 %v476, %v476
        %v509 = vmul.f32 %v477, %v477
        %v510 = vmul.f32 %v478, %v478
        %v511 = vmul.f32 %v479, %v479
        %v512 = vmul.f32 %v480, %v480
        %v513 = vmul.f32 %v481, %v481
        %v514 = vmul.f32 %v482, %v482
        %v515 = vmul.f32 %v483, %v483
        %v516 = vmul.f32 %v484, %v484
        %v517 = vmul.f32 %v485, %v485
        %v518 = vmul.f32 %v486, %v486
        %v519 = vmul.f32 %v487, %v487
        %520 = vadd.xlane.f32.xlu0 %v488
        %v521 = vpop.xlane.xlu0 %520
        %522 = vadd.xlane.f32.xlu0 %v489
        %v523 = vpop.xlane.xlu0 %522
        %524 = vadd.xlane.f32.xlu0 %v490
        %v525 = vpop.xlane.xlu0 %524
        %526 = vadd.xlane.f32.xlu0 %v491
        %v527 = vpop.xlane.xlu0 %526
        %528 = vadd.xlane.f32.xlu0 %v492
        %v529 = vpop.xlane.xlu0 %528
        %530 = vadd.xlane.f32.xlu0 %v493
        %v531 = vpop.xlane.xlu0 %530
        %532 = vadd.xlane.f32.xlu0 %v494
        %v533 = vpop.xlane.xlu0 %532
        %534 = vadd.xlane.f32.xlu0 %v495
        %v535 = vpop.xlane.xlu0 %534
        %536 = vadd.xlane.f32.xlu0 %v496
        %v537 = vpop.xlane.xlu0 %536
        %538 = vadd.xlane.f32.xlu0 %v497
        %v539 = vpop.xlane.xlu0 %538
        %540 = vadd.xlane.f32.xlu0 %v498
        %v541 = vpop.xlane.xlu0 %540
        %542 = vadd.xlane.f32.xlu0 %v499
        %v543 = vpop.xlane.xlu0 %542
        %544 = vadd.xlane.f32.xlu0 %v500
        %v545 = vpop.xlane.xlu0 %544
        %546 = vadd.xlane.f32.xlu0 %v501
        %v547 = vpop.xlane.xlu0 %546
        %548 = vadd.xlane.f32.xlu0 %v502
        %v549 = vpop.xlane.xlu0 %548
        %550 = vadd.xlane.f32.xlu0 %v503
        %v551 = vpop.xlane.xlu0 %550
        %552 = vadd.xlane.f32.xlu0 %v504
        %v553 = vpop.xlane.xlu0 %552
        %554 = vadd.xlane.f32.xlu0 %v505
        %v555 = vpop.xlane.xlu0 %554
        %556 = vadd.xlane.f32.xlu0 %v506
        %v557 = vpop.xlane.xlu0 %556
        %558 = vadd.xlane.f32.xlu0 %v507
        %v559 = vpop.xlane.xlu0 %558
        %560 = vadd.xlane.f32.xlu0 %v508
        %v561 = vpop.xlane.xlu0 %560
        %562 = vadd.xlane.f32.xlu0 %v509
        %v563 = vpop.xlane.xlu0 %562
        %564 = vadd.xlane.f32.xlu0 %v510
        %v565 = vpop.xlane.xlu0 %564
        %566 = vadd.xlane.f32.xlu0 %v511
        %v567 = vpop.xlane.xlu0 %566
        %568 = vadd.xlane.f32.xlu0 %v512
        %v569 = vpop.xlane.xlu0 %568
        %570 = vadd.xlane.f32.xlu0 %v513
        %v571 = vpop.xlane.xlu0 %570
        %572 = vadd.xlane.f32.xlu0 %v514
        %v573 = vpop.xlane.xlu0 %572
        %574 = vadd.xlane.f32.xlu0 %v515
        %v575 = vpop.xlane.xlu0 %574
        %576 = vadd.xlane.f32.xlu0 %v516
        %v577 = vpop.xlane.xlu0 %576
        %578 = vadd.xlane.f32.xlu0 %v517
        %v579 = vpop.xlane.xlu0 %578
        %580 = vadd.xlane.f32.xlu0 %v518
        %v581 = vpop.xlane.xlu0 %580
        %582 = vadd.xlane.f32.xlu0 %v519
        %v583 = vpop.xlane.xlu0 %582
        %v584 = vmul.f32 %v521, %v423
        %v585 = vmul.f32 %v523, %v423
        %v586 = vmul.f32 %v525, %v423
        %v587 = vmul.f32 %v527, %v423
        %v588 = vmul.f32 %v529, %v423
        %v589 = vmul.f32 %v531, %v423
        %v590 = vmul.f32 %v533, %v423
        %v591 = vmul.f32 %v535, %v423
        %v592 = vmul.f32 %v537, %v423
        %v593 = vmul.f32 %v539, %v423
        %v594 = vmul.f32 %v541, %v423
        %v595 = vmul.f32 %v543, %v423
        %v596 = vmul.f32 %v545, %v423
        %v597 = vmul.f32 %v547, %v423
        %v598 = vmul.f32 %v549, %v423
        %v599 = vmul.f32 %v551, %v423
        %v600 = vmul.f32 %v553, %v423
        %v601 = vmul.f32 %v555, %v423
        %v602 = vmul.f32 %v557, %v423
        %v603 = vmul.f32 %v559, %v423
        %v604 = vmul.f32 %v561, %v423
        %v605 = vmul.f32 %v563, %v423
        %v606 = vmul.f32 %v565, %v423
        %v607 = vmul.f32 %v567, %v423
        %v608 = vmul.f32 %v569, %v423
        %v609 = vmul.f32 %v571, %v423
        %v610 = vmul.f32 %v573, %v423
        %v611 = vmul.f32 %v575, %v423
        %v612 = vmul.f32 %v577, %v423
        %v613 = vmul.f32 %v579, %v423
        %v614 = vmul.f32 %v581, %v423
        %v615 = vmul.f32 %v583, %v423
        %v616 = vadd.f32 %v584, 1e-05
        %v617 = vadd.f32 %v585, 1e-05
        %v618 = vadd.f32 %v586, 1e-05
        %v619 = vadd.f32 %v587, 1e-05
        %v620 = vadd.f32 %v588, 1e-05
        %v621 = vadd.f32 %v589, 1e-05
        %v622 = vadd.f32 %v590, 1e-05
        %v623 = vadd.f32 %v591, 1e-05
        %v624 = vadd.f32 %v592, 1e-05
        %v625 = vadd.f32 %v593, 1e-05
        %v626 = vadd.f32 %v594, 1e-05
        %v627 = vadd.f32 %v595, 1e-05
        %v628 = vadd.f32 %v596, 1e-05
        %v629 = vadd.f32 %v597, 1e-05
        %v630 = vadd.f32 %v598, 1e-05
        %v631 = vadd.f32 %v599, 1e-05
        %v632 = vadd.f32 %v600, 1e-05
        %v633 = vadd.f32 %v601, 1e-05
        %v634 = vadd.f32 %v602, 1e-05
        %v635 = vadd.f32 %v603, 1e-05
        %v636 = vadd.f32 %v604, 1e-05
        %v637 = vadd.f32 %v605, 1e-05
        %v638 = vadd.f32 %v606, 1e-05
        %v639 = vadd.f32 %v607, 1e-05
        %v640 = vadd.f32 %v608, 1e-05
        %v641 = vadd.f32 %v609, 1e-05
        %v642 = vadd.f32 %v610, 1e-05
        %v643 = vadd.f32 %v611, 1e-05
        %v644 = vadd.f32 %v612, 1e-05
        %v645 = vadd.f32 %v613, 1e-05
        %v646 = vadd.f32 %v614, 1e-05
        %v647 = vadd.f32 %v615, 1e-05
        %v648 = vrsqrt.pop %v616
        %v649 = vmul.f32 %v648, %v616
        %v650 = vmul.f32 %v649, %v648
        %v651 = vmul.f32 0.5, %v650
        %v652 = vsub.f32 1.5, %v651
        %v653 = vmul.f32 %v648, %v652
        %vm654 = vweird.f32 %v616
        %vm655 = vweird.f32 %v648
        %vm656 = vmor %vm654, %vm655
        %v657 = vsel %vm656, %v648, %v653
        %v658 = vrsqrt.pop %v617
        %v659 = vmul.f32 %v658, %v617
        %v660 = vmul.f32 %v659, %v658
        %v661 = vmul.f32 0.5, %v660
        %v662 = vsub.f32 1.5, %v661
        %v663 = vmul.f32 %v658, %v662
        %vm664 = vweird.f32 %v617
        %vm665 = vweird.f32 %v658
        %vm666 = vmor %vm664, %vm665
        %v667 = vsel %vm666, %v658, %v663
        %v668 = vrsqrt.pop %v618
        %v669 = vmul.f32 %v668, %v618
        %v670 = vmul.f32 %v669, %v668
        %v671 = vmul.f32 0.5, %v670
        %v672 = vsub.f32 1.5, %v671
        %v673 = vmul.f32 %v668, %v672
        %vm674 = vweird.f32 %v618
        %vm675 = vweird.f32 %v668
        %vm676 = vmor %vm674, %vm675
        %v677 = vsel %vm676, %v668, %v673
        %v678 = vrsqrt.pop %v619
        %v679 = vmul.f32 %v678, %v619
        %v680 = vmul.f32 %v679, %v678
        %v681 = vmul.f32 0.5, %v680
        %v682 = vsub.f32 1.5, %v681
        %v683 = vmul.f32 %v678, %v682
        %vm684 = vweird.f32 %v619
        %vm685 = vweird.f32 %v678
        %vm686 = vmor %vm684, %vm685
        %v687 = vsel %vm686, %v678, %v683
        %v688 = vrsqrt.pop %v620
        %v689 = vmul.f32 %v688, %v620
        %v690 = vmul.f32 %v689, %v688
        %v691 = vmul.f32 0.5, %v690
        %v692 = vsub.f32 1.5, %v691
        %v693 = vmul.f32 %v688, %v692
        %vm694 = vweird.f32 %v620
        %vm695 = vweird.f32 %v688
        %vm696 = vmor %vm694, %vm695
        %v697 = vsel %vm696, %v688, %v693
        %v698 = vrsqrt.pop %v621
        %v699 = vmul.f32 %v698, %v621
        %v700 = vmul.f32 %v699, %v698
        %v701 = vmul.f32 0.5, %v700
        %v702 = vsub.f32 1.5, %v701
        %v703 = vmul.f32 %v698, %v702
        %vm704 = vweird.f32 %v621
        %vm705 = vweird.f32 %v698
        %vm706 = vmor %vm704, %vm705
        %v707 = vsel %vm706, %v698, %v703
        %v708 = vrsqrt.pop %v622
        %v709 = vmul.f32 %v708, %v622
        %v710 = vmul.f32 %v709, %v708
        %v711 = vmul.f32 0.5, %v710
        %v712 = vsub.f32 1.5, %v711
        %v713 = vmul.f32 %v708, %v712
        %vm714 = vweird.f32 %v622
        %vm715 = vweird.f32 %v708
        %vm716 = vmor %vm714, %vm715
        %v717 = vsel %vm716, %v708, %v713
        %v718 = vrsqrt.pop %v623
        %v719 = vmul.f32 %v718, %v623
        %v720 = vmul.f32 %v719, %v718
        %v721 = vmul.f32 0.5, %v720
        %v722 = vsub.f32 1.5, %v721
        %v723 = vmul.f32 %v718, %v722
        %vm724 = vweird.f32 %v623
        %vm725 = vweird.f32 %v718
        %vm726 = vmor %vm724, %vm725
        %v727 = vsel %vm726, %v718, %v723
        %v728 = vrsqrt.pop %v624
        %v729 = vmul.f32 %v728, %v624
        %v730 = vmul.f32 %v729, %v728
        %v731 = vmul.f32 0.5, %v730
        %v732 = vsub.f32 1.5, %v731
        %v733 = vmul.f32 %v728, %v732
        %vm734 = vweird.f32 %v624
        %vm735 = vweird.f32 %v728
        %vm736 = vmor %vm734, %vm735
        %v737 = vsel %vm736, %v728, %v733
        %v738 = vrsqrt.pop %v625
        %v739 = vmul.f32 %v738, %v625
        %v740 = vmul.f32 %v739, %v738
        %v741 = vmul.f32 0.5, %v740
        %v742 = vsub.f32 1.5, %v741
        %v743 = vmul.f32 %v738, %v742
        %vm744 = vweird.f32 %v625
        %vm745 = vweird.f32 %v738
        %vm746 = vmor %vm744, %vm745
        %v747 = vsel %vm746, %v738, %v743
        %v748 = vrsqrt.pop %v626
        %v749 = vmul.f32 %v748, %v626
        %v750 = vmul.f32 %v749, %v748
        %v751 = vmul.f32 0.5, %v750
        %v752 = vsub.f32 1.5, %v751
        %v753 = vmul.f32 %v748, %v752
        %vm754 = vweird.f32 %v626
        %vm755 = vweird.f32 %v748
        %vm756 = vmor %vm754, %vm755
        %v757 = vsel %vm756, %v748, %v753
        %v758 = vrsqrt.pop %v627
        %v759 = vmul.f32 %v758, %v627
        %v760 = vmul.f32 %v759, %v758
        %v761 = vmul.f32 0.5, %v760
        %v762 = vsub.f32 1.5, %v761
        %v763 = vmul.f32 %v758, %v762
        %vm764 = vweird.f32 %v627
        %vm765 = vweird.f32 %v758
        %vm766 = vmor %vm764, %vm765
        %v767 = vsel %vm766, %v758, %v763
        %v768 = vrsqrt.pop %v628
        %v769 = vmul.f32 %v768, %v628
        %v770 = vmul.f32 %v769, %v768
        %v771 = vmul.f32 0.5, %v770
        %v772 = vsub.f32 1.5, %v771
        %v773 = vmul.f32 %v768, %v772
        %vm774 = vweird.f32 %v628
        %vm775 = vweird.f32 %v768
        %vm776 = vmor %vm774, %vm775
        %v777 = vsel %vm776, %v768, %v773
        %v778 = vrsqrt.pop %v629
        %v779 = vmul.f32 %v778, %v629
        %v780 = vmul.f32 %v779, %v778
        %v781 = vmul.f32 0.5, %v780
        %v782 = vsub.f32 1.5, %v781
        %v783 = vmul.f32 %v778, %v782
        %vm784 = vweird.f32 %v629
        %vm785 = vweird.f32 %v778
        %vm786 = vmor %vm784, %vm785
        %v787 = vsel %vm786, %v778, %v783
        %v788 = vrsqrt.pop %v630
        %v789 = vmul.f32 %v788, %v630
        %v790 = vmul.f32 %v789, %v788
        %v791 = vmul.f32 0.5, %v790
        %v792 = vsub.f32 1.5, %v791
        %v793 = vmul.f32 %v788, %v792
        %vm794 = vweird.f32 %v630
        %vm795 = vweird.f32 %v788
        %vm796 = vmor %vm794, %vm795
        %v797 = vsel %vm796, %v788, %v793
        %v798 = vrsqrt.pop %v631
        %v799 = vmul.f32 %v798, %v631
        %v800 = vmul.f32 %v799, %v798
        %v801 = vmul.f32 0.5, %v800
        %v802 = vsub.f32 1.5, %v801
        %v803 = vmul.f32 %v798, %v802
        %vm804 = vweird.f32 %v631
        %vm805 = vweird.f32 %v798
        %vm806 = vmor %vm804, %vm805
        %v807 = vsel %vm806, %v798, %v803
        %v808 = vrsqrt.pop %v632
        %v809 = vmul.f32 %v808, %v632
        %v810 = vmul.f32 %v809, %v808
        %v811 = vmul.f32 0.5, %v810
        %v812 = vsub.f32 1.5, %v811
        %v813 = vmul.f32 %v808, %v812
        %vm814 = vweird.f32 %v632
        %vm815 = vweird.f32 %v808
        %vm816 = vmor %vm814, %vm815
        %v817 = vsel %vm816, %v808, %v813
        %v818 = vrsqrt.pop %v633
        %v819 = vmul.f32 %v818, %v633
        %v820 = vmul.f32 %v819, %v818
        %v821 = vmul.f32 0.5, %v820
        %v822 = vsub.f32 1.5, %v821
        %v823 = vmul.f32 %v818, %v822
        %vm824 = vweird.f32 %v633
        %vm825 = vweird.f32 %v818
        %vm826 = vmor %vm824, %vm825
        %v827 = vsel %vm826, %v818, %v823
        %v828 = vrsqrt.pop %v634
        %v829 = vmul.f32 %v828, %v634
        %v830 = vmul.f32 %v829, %v828
        %v831 = vmul.f32 0.5, %v830
        %v832 = vsub.f32 1.5, %v831
        %v833 = vmul.f32 %v828, %v832
        %vm834 = vweird.f32 %v634
        %vm835 = vweird.f32 %v828
        %vm836 = vmor %vm834, %vm835
        %v837 = vsel %vm836, %v828, %v833
        %v838 = vrsqrt.pop %v635
        %v839 = vmul.f32 %v838, %v635
        %v840 = vmul.f32 %v839, %v838
        %v841 = vmul.f32 0.5, %v840
        %v842 = vsub.f32 1.5, %v841
        %v843 = vmul.f32 %v838, %v842
        %vm844 = vweird.f32 %v635
        %vm845 = vweird.f32 %v838
        %vm846 = vmor %vm844, %vm845
        %v847 = vsel %vm846, %v838, %v843
        %v848 = vrsqrt.pop %v636
        %v849 = vmul.f32 %v848, %v636
        %v850 = vmul.f32 %v849, %v848
        %v851 = vmul.f32 0.5, %v850
        %v852 = vsub.f32 1.5, %v851
        %v853 = vmul.f32 %v848, %v852
        %vm854 = vweird.f32 %v636
        %vm855 = vweird.f32 %v848
        %vm856 = vmor %vm854, %vm855
        %v857 = vsel %vm856, %v848, %v853
        %v858 = vrsqrt.pop %v637
        %v859 = vmul.f32 %v858, %v637
        %v860 = vmul.f32 %v859, %v858
        %v861 = vmul.f32 0.5, %v860
        %v862 = vsub.f32 1.5, %v861
        %v863 = vmul.f32 %v858, %v862
        %vm864 = vweird.f32 %v637
        %vm865 = vweird.f32 %v858
        %vm866 = vmor %vm864, %vm865
        %v867 = vsel %vm866, %v858, %v863
        %v868 = vrsqrt.pop %v638
        %v869 = vmul.f32 %v868, %v638
        %v870 = vmul.f32 %v869, %v868
        %v871 = vmul.f32 0.5, %v870
        %v872 = vsub.f32 1.5, %v871
        %v873 = vmul.f32 %v868, %v872
        %vm874 = vweird.f32 %v638
        %vm875 = vweird.f32 %v868
        %vm876 = vmor %vm874, %vm875
        %v877 = vsel %vm876, %v868, %v873
        %v878 = vrsqrt.pop %v639
        %v879 = vmul.f32 %v878, %v639
        %v880 = vmul.f32 %v879, %v878
        %v881 = vmul.f32 0.5, %v880
        %v882 = vsub.f32 1.5, %v881
        %v883 = vmul.f32 %v878, %v882
        %vm884 = vweird.f32 %v639
        %vm885 = vweird.f32 %v878
        %vm886 = vmor %vm884, %vm885
        %v887 = vsel %vm886, %v878, %v883
        %v888 = vrsqrt.pop %v640
        %v889 = vmul.f32 %v888, %v640
        %v890 = vmul.f32 %v889, %v888
        %v891 = vmul.f32 0.5, %v890
        %v892 = vsub.f32 1.5, %v891
        %v893 = vmul.f32 %v888, %v892
        %vm894 = vweird.f32 %v640
        %vm895 = vweird.f32 %v888
        %vm896 = vmor %vm894, %vm895
        %v897 = vsel %vm896, %v888, %v893
        %v898 = vrsqrt.pop %v641
        %v899 = vmul.f32 %v898, %v641
        %v900 = vmul.f32 %v899, %v898
        %v901 = vmul.f32 0.5, %v900
        %v902 = vsub.f32 1.5, %v901
        %v903 = vmul.f32 %v898, %v902
        %vm904 = vweird.f32 %v641
        %vm905 = vweird.f32 %v898
        %vm906 = vmor %vm904, %vm905
        %v907 = vsel %vm906, %v898, %v903
        %v908 = vrsqrt.pop %v642
        %v909 = vmul.f32 %v908, %v642
        %v910 = vmul.f32 %v909, %v908
        %v911 = vmul.f32 0.5, %v910
        %v912 = vsub.f32 1.5, %v911
        %v913 = vmul.f32 %v908, %v912
        %vm914 = vweird.f32 %v642
        %vm915 = vweird.f32 %v908
        %vm916 = vmor %vm914, %vm915
        %v917 = vsel %vm916, %v908, %v913
        %v918 = vrsqrt.pop %v643
        %v919 = vmul.f32 %v918, %v643
        %v920 = vmul.f32 %v919, %v918
        %v921 = vmul.f32 0.5, %v920
        %v922 = vsub.f32 1.5, %v921
        %v923 = vmul.f32 %v918, %v922
        %vm924 = vweird.f32 %v643
        %vm925 = vweird.f32 %v918
        %vm926 = vmor %vm924, %vm925
        %v927 = vsel %vm926, %v918, %v923
        %v928 = vrsqrt.pop %v644
        %v929 = vmul.f32 %v928, %v644
        %v930 = vmul.f32 %v929, %v928
        %v931 = vmul.f32 0.5, %v930
        %v932 = vsub.f32 1.5, %v931
        %v933 = vmul.f32 %v928, %v932
        %vm934 = vweird.f32 %v644
        %vm935 = vweird.f32 %v928
        %vm936 = vmor %vm934, %vm935
        %v937 = vsel %vm936, %v928, %v933
        %v938 = vrsqrt.pop %v645
        %v939 = vmul.f32 %v938, %v645
        %v940 = vmul.f32 %v939, %v938
        %v941 = vmul.f32 0.5, %v940
        %v942 = vsub.f32 1.5, %v941
        %v943 = vmul.f32 %v938, %v942
        %vm944 = vweird.f32 %v645
        %vm945 = vweird.f32 %v938
        %vm946 = vmor %vm944, %vm945
        %v947 = vsel %vm946, %v938, %v943
        %v948 = vrsqrt.pop %v646
        %v949 = vmul.f32 %v948, %v646
        %v950 = vmul.f32 %v949, %v948
        %v951 = vmul.f32 0.5, %v950
        %v952 = vsub.f32 1.5, %v951
        %v953 = vmul.f32 %v948, %v952
        %vm954 = vweird.f32 %v646
        %vm955 = vweird.f32 %v948
        %vm956 = vmor %vm954, %vm955
        %v957 = vsel %vm956, %v948, %v953
        %v958 = vrsqrt.pop %v647
        %v959 = vmul.f32 %v958, %v647
        %v960 = vmul.f32 %v959, %v958
        %v961 = vmul.f32 0.5, %v960
        %v962 = vsub.f32 1.5, %v961
        %v963 = vmul.f32 %v958, %v962
        %vm964 = vweird.f32 %v647
        %vm965 = vweird.f32 %v958
        %vm966 = vmor %vm964, %vm965
        %v967 = vsel %vm966, %v958, %v963
        %v968 = vmul.f32 %v456, %v657
        %v969 = vmul.f32 %v457, %v667
        %v970 = vmul.f32 %v458, %v677
        %v971 = vmul.f32 %v459, %v687
        %v972 = vmul.f32 %v460, %v697
        %v973 = vmul.f32 %v461, %v707
        %v974 = vmul.f32 %v462, %v717
        %v975 = vmul.f32 %v463, %v727
        %v976 = vmul.f32 %v464, %v737
        %v977 = vmul.f32 %v465, %v747
        %v978 = vmul.f32 %v466, %v757
        %v979 = vmul.f32 %v467, %v767
        %v980 = vmul.f32 %v468, %v777
        %v981 = vmul.f32 %v469, %v787
        %v982 = vmul.f32 %v470, %v797
        %v983 = vmul.f32 %v471, %v807
        %v984 = vmul.f32 %v472, %v817
        %v985 = vmul.f32 %v473, %v827
        %v986 = vmul.f32 %v474, %v837
        %v987 = vmul.f32 %v475, %v847
        %v988 = vmul.f32 %v476, %v857
        %v989 = vmul.f32 %v477, %v867
        %v990 = vmul.f32 %v478, %v877
        %v991 = vmul.f32 %v479, %v887
        %v992 = vmul.f32 %v480, %v897
        %v993 = vmul.f32 %v481, %v907
        %v994 = vmul.f32 %v482, %v917
        %v995 = vmul.f32 %v483, %v927
        %v996 = vmul.f32 %v484, %v937
        %v997 = vmul.f32 %v485, %v947
        %v998 = vmul.f32 %v486, %v957
        %v999 = vmul.f32 %v487, %v967
        %v1000 = vld [vmem:[#allocation5] sm:$0x1]
        %v1002 = vperm.slane %v1000, 0
        %v1004 = vmul.f32 %v968, %v1002
        %v1005 = vmul.f32 %v969, %v1002
        %v1006 = vmul.f32 %v970, %v1002
        %v1007 = vmul.f32 %v971, %v1002
        %v1008 = vmul.f32 %v972, %v1002
        %v1009 = vmul.f32 %v973, %v1002
        %v1010 = vmul.f32 %v974, %v1002
        %v1011 = vmul.f32 %v975, %v1002
        %v1012 = vmul.f32 %v976, %v1002
        %v1013 = vmul.f32 %v977, %v1002
        %v1014 = vmul.f32 %v978, %v1002
        %v1015 = vmul.f32 %v979, %v1002
        %v1016 = vmul.f32 %v980, %v1002
        %v1017 = vmul.f32 %v981, %v1002
        %v1018 = vmul.f32 %v982, %v1002
        %v1019 = vmul.f32 %v983, %v1002
        %v1020 = vmul.f32 %v984, %v1002
        %v1021 = vmul.f32 %v985, %v1002
        %v1022 = vmul.f32 %v986, %v1002
        %v1023 = vmul.f32 %v987, %v1002
        %v1024 = vmul.f32 %v988, %v1002
        %v1025 = vmul.f32 %v989, %v1002
        %v1026 = vmul.f32 %v990, %v1002
        %v1027 = vmul.f32 %v991, %v1002
        %v1028 = vmul.f32 %v992, %v1002
        %v1029 = vmul.f32 %v993, %v1002
        %v1030 = vmul.f32 %v994, %v1002
        %v1031 = vmul.f32 %v995, %v1002
        %v1032 = vmul.f32 %v996, %v1002
        %v1033 = vmul.f32 %v997, %v1002
        %v1034 = vmul.f32 %v998, %v1002
        %v1035 = vmul.f32 %v999, %v1002
        %v1036 = vld [vmem:[%s2] sm:$0x1]
        %v1038 = vperm.slane %v1036, 0
        %v1040 = vadd.f32 %v1004, %v1038
        %v1041 = vadd.f32 %v1005, %v1038
        %v1042 = vadd.f32 %v1006, %v1038
        %v1043 = vadd.f32 %v1007, %v1038
        %v1044 = vadd.f32 %v1008, %v1038
        %v1045 = vadd.f32 %v1009, %v1038
        %v1046 = vadd.f32 %v1010, %v1038
        %v1047 = vadd.f32 %v1011, %v1038
        %v1048 = vadd.f32 %v1012, %v1038
        %v1049 = vadd.f32 %v1013, %v1038
        %v1050 = vadd.f32 %v1014, %v1038
        %v1051 = vadd.f32 %v1015, %v1038
        %v1052 = vadd.f32 %v1016, %v1038
        %v1053 = vadd.f32 %v1017, %v1038
        %v1054 = vadd.f32 %v1018, %v1038
        %v1055 = vadd.f32 %v1019, %v1038
        %v1056 = vadd.f32 %v1020, %v1038
        %v1057 = vadd.f32 %v1021, %v1038
        %v1058 = vadd.f32 %v1022, %v1038
        %v1059 = vadd.f32 %v1023, %v1038
        %v1060 = vadd.f32 %v1024, %v1038
        %v1061 = vadd.f32 %v1025, %v1038
        %v1062 = vadd.f32 %v1026, %v1038
        %v1063 = vadd.f32 %v1027, %v1038
        %v1064 = vadd.f32 %v1028, %v1038
        %v1065 = vadd.f32 %v1029, %v1038
        %v1066 = vadd.f32 %v1030, %v1038
        %v1067 = vadd.f32 %v1031, %v1038
        %v1068 = vadd.f32 %v1032, %v1038
        %v1069 = vadd.f32 %v1033, %v1038
        %v1070 = vadd.f32 %v1034, %v1038
        %v1071 = vadd.f32 %v1035, %v1038
        %v1072 = vlaneseq
        %v1073 = vshrl.u32 %v1072, 7
        %v1074 = vadd.s32 %v1073, 8
        %v1075 = vadd.s32 %v1073, 16
        %v1076 = vadd.s32 %v1073, 24
        %v1077 = vadd.s32 %v1073, 32
        %v1078 = vadd.s32 %v1073, 40
        %v1079 = vadd.s32 %v1073, 48
        %v1080 = vadd.s32 %v1073, 56
        %v1081 = vadd.s32 %v1073, 64
        %v1082 = vadd.s32 %v1073, 72
        %v1083 = vadd.s32 %v1073, 80
        %v1084 = vadd.s32 %v1073, 88
        %v1085 = vadd.s32 %v1073, 96
        %v1086 = vadd.s32 %v1073, 104
        %v1087 = vadd.s32 %v1073, 112
        %v1088 = vadd.s32 %v1073, 120
        %v1089 = vadd.s32 %v1073, 128
        %v1090 = vadd.s32 %v1073, 136
        %v1091 = vadd.s32 %v1073, 144
        %v1092 = vadd.s32 %v1073, 152
        %v1093 = vadd.s32 %v1073, 160
        %v1094 = vadd.s32 %v1073, 168
        %v1095 = vadd.s32 %v1073, 176
        %v1096 = vadd.s32 %v1073, 184
        %v1097 = vadd.s32 %v1073, 192
        %v1098 = vadd.s32 %v1073, 200
        %v1099 = vadd.s32 %v1073, 208
        %v1100 = vadd.s32 %v1073, 216
        %v1101 = vadd.s32 %v1073, 224
        %v1102 = vadd.s32 %v1073, 232
        %v1103 = vadd.s32 %v1073, 240
        %v1104 = vadd.s32 %v1073, 248
        %vm1105 = vcmp.ge.s32.totalorder %v1073, 59
        %vm1106 = vcmp.ge.s32.totalorder %v1074, 59
        %vm1107 = vcmp.ge.s32.totalorder %v1075, 59
        %vm1108 = vcmp.ge.s32.totalorder %v1076, 59
        %vm1109 = vcmp.ge.s32.totalorder %v1077, 59
        %vm1110 = vcmp.ge.s32.totalorder %v1078, 59
        %vm1111 = vcmp.ge.s32.totalorder %v1079, 59
        %vm1112 = vcmp.ge.s32.totalorder %v1080, 59
        %vm1113 = vcmp.ge.s32.totalorder %v1081, 59
        %vm1114 = vcmp.ge.s32.totalorder %v1082, 59
        %vm1115 = vcmp.ge.s32.totalorder %v1083, 59
        %vm1116 = vcmp.ge.s32.totalorder %v1084, 59
        %vm1117 = vcmp.ge.s32.totalorder %v1085, 59
        %vm1118 = vcmp.ge.s32.totalorder %v1086, 59
        %vm1119 = vcmp.ge.s32.totalorder %v1087, 59
        %vm1120 = vcmp.ge.s32.totalorder %v1088, 59
        %vm1121 = vcmp.ge.s32.totalorder %v1089, 59
        %vm1122 = vcmp.ge.s32.totalorder %v1090, 59
        %vm1123 = vcmp.ge.s32.totalorder %v1091, 59
        %vm1124 = vcmp.ge.s32.totalorder %v1092, 59
        %vm1125 = vcmp.ge.s32.totalorder %v1093, 59
        %vm1126 = vcmp.ge.s32.totalorder %v1094, 59
        %vm1127 = vcmp.ge.s32.totalorder %v1095, 59
        %vm1128 = vcmp.ge.s32.totalorder %v1096, 59
        %vm1129 = vcmp.ge.s32.totalorder %v1097, 59
        %vm1130 = vcmp.ge.s32.totalorder %v1098, 59
        %vm1131 = vcmp.ge.s32.totalorder %v1099, 59
        %vm1132 = vcmp.ge.s32.totalorder %v1100, 59
        %vm1133 = vcmp.ge.s32.totalorder %v1101, 59
        %vm1134 = vcmp.ge.s32.totalorder %v1102, 59
        %vm1135 = vcmp.ge.s32.totalorder %v1103, 59
        %vm1136 = vcmp.ge.s32.totalorder %v1104, 59
        %v1137 = vsel %vm1105, 1, 0
        %v1138 = vsel %vm1106, 1, 0
        %v1139 = vsel %vm1107, 1, 0
        %v1140 = vsel %vm1108, 1, 0
        %v1141 = vsel %vm1109, 1, 0
        %v1142 = vsel %vm1110, 1, 0
        %v1143 = vsel %vm1111, 1, 0
        %v1144 = vsel %vm1112, 1, 0
        %v1145 = vsel %vm1113, 1, 0
        %v1146 = vsel %vm1114, 1, 0
        %v1147 = vsel %vm1115, 1, 0
        %v1148 = vsel %vm1116, 1, 0
        %v1149 = vsel %vm1117, 1, 0
        %v1150 = vsel %vm1118, 1, 0
        %v1151 = vsel %vm1119, 1, 0
        %v1152 = vsel %vm1120, 1, 0
        %v1153 = vsel %vm1121, 1, 0
        %v1154 = vsel %vm1122, 1, 0
        %v1155 = vsel %vm1123, 1, 0
        %v1156 = vsel %vm1124, 1, 0
        %v1157 = vsel %vm1125, 1, 0
        %v1158 = vsel %vm1126, 1, 0
        %v1159 = vsel %vm1127, 1, 0
        %v1160 = vsel %vm1128, 1, 0
        %v1161 = vsel %vm1129, 1, 0
        %v1162 = vsel %vm1130, 1, 0
        %v1163 = vsel %vm1131, 1, 0
        %v1164 = vsel %vm1132, 1, 0
        %v1165 = vsel %vm1133, 1, 0
        %v1166 = vsel %vm1134, 1, 0
        %v1167 = vsel %vm1135, 1, 0
        %v1168 = vsel %vm1136, 1, 0
        %vm1169 = vcmp.eq.s32.totalorder %v1137, 1
        %vm1170 = vcmp.eq.s32.totalorder %v1138, 1
        %vm1171 = vcmp.eq.s32.totalorder %v1139, 1
        %vm1172 = vcmp.eq.s32.totalorder %v1140, 1
        %vm1173 = vcmp.eq.s32.totalorder %v1141, 1
        %vm1174 = vcmp.eq.s32.totalorder %v1142, 1
        %vm1175 = vcmp.eq.s32.totalorder %v1143, 1
        %vm1176 = vcmp.eq.s32.totalorder %v1144, 1
        %vm1177 = vcmp.eq.s32.totalorder %v1145, 1
        %vm1178 = vcmp.eq.s32.totalorder %v1146, 1
        %vm1179 = vcmp.eq.s32.totalorder %v1147, 1
        %vm1180 = vcmp.eq.s32.totalorder %v1148, 1
        %vm1181 = vcmp.eq.s32.totalorder %v1149, 1
        %vm1182 = vcmp.eq.s32.totalorder %v1150, 1
        %vm1183 = vcmp.eq.s32.totalorder %v1151, 1
        %vm1184 = vcmp.eq.s32.totalorder %v1152, 1
        %vm1185 = vcmp.eq.s32.totalorder %v1153, 1
        %vm1186 = vcmp.eq.s32.totalorder %v1154, 1
        %vm1187 = vcmp.eq.s32.totalorder %v1155, 1
        %vm1188 = vcmp.eq.s32.totalorder %v1156, 1
        %vm1189 = vcmp.eq.s32.totalorder %v1157, 1
        %vm1190 = vcmp.eq.s32.totalorder %v1158, 1
        %vm1191 = vcmp.eq.s32.totalorder %v1159, 1
        %vm1192 = vcmp.eq.s32.totalorder %v1160, 1
        %vm1193 = vcmp.eq.s32.totalorder %v1161, 1
        %vm1194 = vcmp.eq.s32.totalorder %v1162, 1
        %vm1195 = vcmp.eq.s32.totalorder %v1163, 1
        %vm1196 = vcmp.eq.s32.totalorder %v1164, 1
        %vm1197 = vcmp.eq.s32.totalorder %v1165, 1
        %vm1198 = vcmp.eq.s32.totalorder %v1166, 1
        %vm1199 = vcmp.eq.s32.totalorder %v1167, 1
        %vm1200 = vcmp.eq.s32.totalorder %v1168, 1
        %v1201 = vsel %vm1169, %v1040, 0.0
        %v1202 = vsel %vm1170, %v1041, 0.0
        %v1203 = vsel %vm1171, %v1042, 0.0
        %v1204 = vsel %vm1172, %v1043, 0.0
        %v1205 = vsel %vm1173, %v1044, 0.0
        %v1206 = vsel %vm1174, %v1045, 0.0
        %v1207 = vsel %vm1175, %v1046, 0.0
        %v1208 = vsel %vm1176, %v1047, 0.0
        %v1209 = vsel %vm1177, %v1048, 0.0
        %v1210 = vsel %vm1178, %v1049, 0.0
        %v1211 = vsel %vm1179, %v1050, 0.0
        %v1212 = vsel %vm1180, %v1051, 0.0
        %v1213 = vsel %vm1181, %v1052, 0.0
        %v1214 = vsel %vm1182, %v1053, 0.0
        %v1215 = vsel %vm1183, %v1054, 0.0
        %v1216 = vsel %vm1184, %v1055, 0.0
        %v1217 = vsel %vm1185, %v1056, 0.0
        %v1218 = vsel %vm1186, %v1057, 0.0
        %v1219 = vsel %vm1187, %v1058, 0.0
        %v1220 = vsel %vm1188, %v1059, 0.0
        %v1221 = vsel %vm1189, %v1060, 0.0
        %v1222 = vsel %vm1190, %v1061, 0.0
        %v1223 = vsel %vm1191, %v1062, 0.0
        %v1224 = vsel %vm1192, %v1063, 0.0
        %v1225 = vsel %vm1193, %v1064, 0.0
        %v1226 = vsel %vm1194, %v1065, 0.0
        %v1227 = vsel %vm1195, %v1066, 0.0
        %v1228 = vsel %vm1196, %v1067, 0.0
        %v1229 = vsel %vm1197, %v1068, 0.0
        %v1230 = vsel %vm1198, %v1069, 0.0
        %v1231 = vsel %vm1199, %v1070, 0.0
        %v1232 = vsel %vm1200, %v1071, 0.0
        %v1233 = vld [vmem:[#allocation7] sm:$0xff]
        %v1234 = vld [vmem:[#allocation7 + $0x8] sm:$0xff]
        %v1235 = vld [vmem:[#allocation7 + $0x10] sm:$0xff]
        %v1236 = vld [vmem:[#allocation7 + $0x18] sm:$0xff]
        %v1237 = vld [vmem:[#allocation7 + $0x20] sm:$0xff]
        %v1238 = vld [vmem:[#allocation7 + $0x28] sm:$0xff]
        %v1239 = vld [vmem:[#allocation7 + $0x30] sm:$0xff]
        %v1240 = vld [vmem:[#allocation7 + $0x38] sm:$0xff]
        %v1241 = vld [vmem:[#allocation7 + $0x40] sm:$0xff]
        %v1242 = vld [vmem:[#allocation7 + $0x48] sm:$0xff]
        %v1243 = vld [vmem:[#allocation7 + $0x50] sm:$0xff]
        %v1244 = vld [vmem:[#allocation7 + $0x58] sm:$0xff]
        %v1245 = vld [vmem:[#allocation7 + $0x60] sm:$0xff]
        %v1246 = vld [vmem:[#allocation7 + $0x68] sm:$0xff]
        %v1247 = vld [vmem:[#allocation7 + $0x70] sm:$0xff]
        %v1248 = vld [vmem:[#allocation7 + $0x78] sm:$0xff]
        %v1249 = vld [vmem:[#allocation7 + $0x80] sm:$0xff]
        %v1250 = vld [vmem:[#allocation7 + $0x88] sm:$0xff]
        %v1251 = vld [vmem:[#allocation7 + $0x90] sm:$0xff]
        %v1252 = vld [vmem:[#allocation7 + $0x98] sm:$0xff]
        %v1253 = vld [vmem:[#allocation7 + $0xa0] sm:$0xff]
        %v1254 = vld [vmem:[#allocation7 + $0xa8] sm:$0xff]
        %v1255 = vld [vmem:[#allocation7 + $0xb0] sm:$0xff]
        %v1256 = vld [vmem:[#allocation7 + $0xb8] sm:$0xff]
        %v1257 = vld [vmem:[#allocation7 + $0xc0] sm:$0xff]
        %v1258 = vld [vmem:[#allocation7 + $0xc8] sm:$0xff]
        %v1259 = vld [vmem:[#allocation7 + $0xd0] sm:$0xff]
        %v1260 = vld [vmem:[#allocation7 + $0xd8] sm:$0xff]
        %v1261 = vld [vmem:[#allocation7 + $0xe0] sm:$0xff]
        %v1262 = vld [vmem:[#allocation7 + $0xe8] sm:$0xff]
        %v1263 = vld [vmem:[#allocation7 + $0xf0] sm:$0xff]
        %v1264 = vld [vmem:[#allocation7 + $0xf8] sm:$0xff]
        %v1265 = vld [vmem:[#allocation7 + $0x100] sm:$0xff]
        %v1266 = vld [vmem:[#allocation7 + $0x108] sm:$0xff]
        %v1267 = vld [vmem:[#allocation7 + $0x110] sm:$0xff]
        %v1268 = vld [vmem:[#allocation7 + $0x118] sm:$0xff]
        %v1269 = vld [vmem:[#allocation7 + $0x120] sm:$0xff]
        %v1270 = vld [vmem:[#allocation7 + $0x128] sm:$0xff]
        %v1271 = vld [vmem:[#allocation7 + $0x130] sm:$0xff]
        %v1272 = vld [vmem:[#allocation7 + $0x138] sm:$0xff]
        %v1273 = vld [vmem:[#allocation7 + $0x140] sm:$0xff]
        %v1274 = vld [vmem:[#allocation7 + $0x148] sm:$0xff]
        %v1275 = vld [vmem:[#allocation7 + $0x150] sm:$0xff]
        %v1276 = vld [vmem:[#allocation7 + $0x158] sm:$0xff]
        %v1277 = vld [vmem:[#allocation7 + $0x160] sm:$0xff]
        %v1278 = vld [vmem:[#allocation7 + $0x168] sm:$0xff]
        %v1279 = vld [vmem:[#allocation7 + $0x170] sm:$0xff]
        %v1280 = vld [vmem:[#allocation7 + $0x178] sm:$0xff]
        %1281 = vmatpush.msra.mxu0 %v1278
        %1282 = vmatpush.msra.mxu0 %v1275
        %1283 = vmatpush.msra.mxu0 %v1272
        %1284 = vmatpush.msra.mxu0 %v1269
        %1285 = vmatpush.msra.mxu0 %v1266
        %1286 = vmatpush.msra.mxu0 %v1263
        %1287 = vmatpush.msra.mxu0 %v1260
        %1288 = vmatpush.msra.mxu0 %v1257
        %1289 = vmatpush.msra.mxu0 %v1254
        %1290 = vmatpush.msra.mxu0 %v1251
        %1291 = vmatpush.msra.mxu0 %v1248
        %1292 = vmatpush.msra.mxu0 %v1245
        %1293 = vmatpush.msra.mxu0 %v1242
        %1294 = vmatpush.msra.mxu0 %v1239
        %1295 = vmatpush.msra.mxu0 %v1236
        %1296 = vmatpush.msra.mxu0 %v1233
        %1297 = vmatmul.f32.gmra.mxu0 %v1201
        %v1298 = vpop.f32.mrf.mxu0
        %v1299 = vadd.f32 0.0, %v1298
        %1300 = vmatmul.f32.gmra.mxu0 %v1202
        %v1301 = vpop.f32.mrf.mxu0
        %v1302 = vadd.f32 0.0, %v1301
        %1303 = vmatmul.f32.gmra.mxu0 %v1203
        %v1304 = vpop.f32.mrf.mxu0
        %v1305 = vadd.f32 0.0, %v1304
        %1306 = vmatmul.f32.gmra.mxu0 %v1204
        %v1307 = vpop.f32.mrf.mxu0
        %v1308 = vadd.f32 0.0, %v1307
        %1309 = vmatmul.f32.gmra.mxu0 %v1205
        %v1310 = vpop.f32.mrf.mxu0
        %v1311 = vadd.f32 0.0, %v1310
        %1312 = vmatmul.f32.gmra.mxu0 %v1206
        %v1313 = vpop.f32.mrf.mxu0
        %v1314 = vadd.f32 0.0, %v1313
        %1315 = vmatmul.f32.gmra.mxu0 %v1207
        %v1316 = vpop.f32.mrf.mxu0
        %v1317 = vadd.f32 0.0, %v1316
        %1318 = vmatmul.f32.gmra.mxu0 %v1208
        %v1319 = vpop.f32.mrf.mxu0
        %v1320 = vadd.f32 0.0, %v1319
        %1321 = vmatmul.f32.gmra.mxu0 %v1209
        %v1322 = vpop.f32.mrf.mxu0
        %v1323 = vadd.f32 0.0, %v1322
        %1324 = vmatmul.f32.gmra.mxu0 %v1210
        %v1325 = vpop.f32.mrf.mxu0
        %v1326 = vadd.f32 0.0, %v1325
        %1327 = vmatmul.f32.gmra.mxu0 %v1211
        %v1328 = vpop.f32.mrf.mxu0
        %v1329 = vadd.f32 0.0, %v1328
        %1330 = vmatmul.f32.gmra.mxu0 %v1212
        %v1331 = vpop.f32.mrf.mxu0
        %v1332 = vadd.f32 0.0, %v1331
        %1333 = vmatmul.f32.gmra.mxu0 %v1213
        %v1334 = vpop.f32.mrf.mxu0
        %v1335 = vadd.f32 0.0, %v1334
        %1336 = vmatmul.f32.gmra.mxu0 %v1214
        %v1337 = vpop.f32.mrf.mxu0
        %v1338 = vadd.f32 0.0, %v1337
        %1339 = vmatmul.f32.gmra.mxu0 %v1215
        %v1340 = vpop.f32.mrf.mxu0
        %v1341 = vadd.f32 0.0, %v1340
        %1342 = vmatmul.f32.gmra.mxu0 %v1216
        %v1343 = vpop.f32.mrf.mxu0
        %v1344 = vadd.f32 0.0, %v1343
        %1345 = vmatmul.f32.gmra.mxu0 %v1217
        %v1346 = vpop.f32.mrf.mxu0
        %v1347 = vadd.f32 0.0, %v1346
        %1348 = vmatmul.f32.gmra.mxu0 %v1218
        %v1349 = vpop.f32.mrf.mxu0
        %v1350 = vadd.f32 0.0, %v1349
        %1351 = vmatmul.f32.gmra.mxu0 %v1219
        %v1352 = vpop.f32.mrf.mxu0
        %v1353 = vadd.f32 0.0, %v1352
        %1354 = vmatmul.f32.gmra.mxu0 %v1220
        %v1355 = vpop.f32.mrf.mxu0
        %v1356 = vadd.f32 0.0, %v1355
        %1357 = vmatmul.f32.gmra.mxu0 %v1221
        %v1358 = vpop.f32.mrf.mxu0
        %v1359 = vadd.f32 0.0, %v1358
        %1360 = vmatmul.f32.gmra.mxu0 %v1222
        %v1361 = vpop.f32.mrf.mxu0
        %v1362 = vadd.f32 0.0, %v1361
        %1363 = vmatmul.f32.gmra.mxu0 %v1223
        %v1364 = vpop.f32.mrf.mxu0
        %v1365 = vadd.f32 0.0, %v1364
        %1366 = vmatmul.f32.gmra.mxu0 %v1224
        %v1367 = vpop.f32.mrf.mxu0
        %v1368 = vadd.f32 0.0, %v1367
        %1369 = vmatmul.f32.gmra.mxu0 %v1225
        %v1370 = vpop.f32.mrf.mxu0
        %v1371 = vadd.f32 0.0, %v1370
        %1372 = vmatmul.f32.gmra.mxu0 %v1226
        %v1373 = vpop.f32.mrf.mxu0
        %v1374 = vadd.f32 0.0, %v1373
        %1375 = vmatmul.f32.gmra.mxu0 %v1227
        %v1376 = vpop.f32.mrf.mxu0
        %v1377 = vadd.f32 0.0, %v1376
        %1378 = vmatmul.f32.gmra.mxu0 %v1228
        %v1379 = vpop.f32.mrf.mxu0
        %v1380 = vadd.f32 0.0, %v1379
        %1381 = vmatmul.f32.gmra.mxu0 %v1229
        %v1382 = vpop.f32.mrf.mxu0
        %v1383 = vadd.f32 0.0, %v1382
        %1384 = vmatmul.f32.gmra.mxu0 %v1230
        %v1385 = vpop.f32.mrf.mxu0
        %v1386 = vadd.f32 0.0, %v1385
        %1387 = vmatmul.f32.gmra.mxu0 %v1231
        %v1388 = vpop.f32.mrf.mxu0
        %v1389 = vadd.f32 0.0, %v1388
        %1390 = vmatmul.f32.gmra.mxu0 %v1232
        %v1391 = vpop.f32.mrf.mxu0
        %v1392 = vadd.f32 0.0, %v1391
        %1393 = vdwg.mxu0
        %1394 = vmatpush.msra.mxu0 %v1279
        %1395 = vmatpush.msra.mxu0 %v1276
        %1396 = vmatpush.msra.mxu0 %v1273
        %1397 = vmatpush.msra.mxu0 %v1270
        %1398 = vmatpush.msra.mxu0 %v1267
        %1399 = vmatpush.msra.mxu0 %v1264
        %1400 = vmatpush.msra.mxu0 %v1261
        %1401 = vmatpush.msra.mxu0 %v1258
        %1402 = vmatpush.msra.mxu0 %v1255
        %1403 = vmatpush.msra.mxu0 %v1252
        %1404 = vmatpush.msra.mxu0 %v1249
        %1405 = vmatpush.msra.mxu0 %v1246
        %1406 = vmatpush.msra.mxu0 %v1243
        %1407 = vmatpush.msra.mxu0 %v1240
        %1408 = vmatpush.msra.mxu0 %v1237
        %1409 = vmatpush.msra.mxu0 %v1234
        %1410 = vmatmul.f32.gmra.mxu0 %v1201
        %v1411 = vpop.f32.mrf.mxu0
        %v1412 = vadd.f32 0.0, %v1411
        %1413 = vmatmul.f32.gmra.mxu0 %v1202
        %v1414 = vpop.f32.mrf.mxu0
        %v1415 = vadd.f32 0.0, %v1414
        %1416 = vmatmul.f32.gmra.mxu0 %v1203
        %v1417 = vpop.f32.mrf.mxu0
        %v1418 = vadd.f32 0.0, %v1417
        %1419 = vmatmul.f32.gmra.mxu0 %v1204
        %v1420 = vpop.f32.mrf.mxu0
        %v1421 = vadd.f32 0.0, %v1420
        %1422 = vmatmul.f32.gmra.mxu0 %v1205
        %v1423 = vpop.f32.mrf.mxu0
        %v1424 = vadd.f32 0.0, %v1423
        %1425 = vmatmul.f32.gmra.mxu0 %v1206
        %v1426 = vpop.f32.mrf.mxu0
        %v1427 = vadd.f32 0.0, %v1426
        %1428 = vmatmul.f32.gmra.mxu0 %v1207
        %v1429 = vpop.f32.mrf.mxu0
        %v1430 = vadd.f32 0.0, %v1429
        %1431 = vmatmul.f32.gmra.mxu0 %v1208
        %v1432 = vpop.f32.mrf.mxu0
        %v1433 = vadd.f32 0.0, %v1432
        %1434 = vmatmul.f32.gmra.mxu0 %v1209
        %v1435 = vpop.f32.mrf.mxu0
        %v1436 = vadd.f32 0.0, %v1435
        %1437 = vmatmul.f32.gmra.mxu0 %v1210
        %v1438 = vpop.f32.mrf.mxu0
        %v1439 = vadd.f32 0.0, %v1438
        %1440 = vmatmul.f32.gmra.mxu0 %v1211
        %v1441 = vpop.f32.mrf.mxu0
        %v1442 = vadd.f32 0.0, %v1441
        %1443 = vmatmul.f32.gmra.mxu0 %v1212
        %v1444 = vpop.f32.mrf.mxu0
        %v1445 = vadd.f32 0.0, %v1444
        %1446 = vmatmul.f32.gmra.mxu0 %v1213
        %v1447 = vpop.f32.mrf.mxu0
        %v1448 = vadd.f32 0.0, %v1447
        %1449 = vmatmul.f32.gmra.mxu0 %v1214
        %v1450 = vpop.f32.mrf.mxu0
        %v1451 = vadd.f32 0.0, %v1450
        %1452 = vmatmul.f32.gmra.mxu0 %v1215
        %v1453 = vpop.f32.mrf.mxu0
        %v1454 = vadd.f32 0.0, %v1453
        %1455 = vmatmul.f32.gmra.mxu0 %v1216
        %v1456 = vpop.f32.mrf.mxu0
        %v1457 = vadd.f32 0.0, %v1456
        %1458 = vmatmul.f32.gmra.mxu0 %v1217
        %v1459 = vpop.f32.mrf.mxu0
        %v1460 = vadd.f32 0.0, %v1459
        %1461 = vmatmul.f32.gmra.mxu0 %v1218
        %v1462 = vpop.f32.mrf.mxu0
        %v1463 = vadd.f32 0.0, %v1462
        %1464 = vmatmul.f32.gmra.mxu0 %v1219
        %v1465 = vpop.f32.mrf.mxu0
        %v1466 = vadd.f32 0.0, %v1465
        %1467 = vmatmul.f32.gmra.mxu0 %v1220
        %v1468 = vpop.f32.mrf.mxu0
        %v1469 = vadd.f32 0.0, %v1468
        %1470 = vmatmul.f32.gmra.mxu0 %v1221
        %v1471 = vpop.f32.mrf.mxu0
        %v1472 = vadd.f32 0.0, %v1471
        %1473 = vmatmul.f32.gmra.mxu0 %v1222
        %v1474 = vpop.f32.mrf.mxu0
        %v1475 = vadd.f32 0.0, %v1474
        %1476 = vmatmul.f32.gmra.mxu0 %v1223
        %v1477 = vpop.f32.mrf.mxu0
        %v1478 = vadd.f32 0.0, %v1477
        %1479 = vmatmul.f32.gmra.mxu0 %v1224
        %v1480 = vpop.f32.mrf.mxu0
        %v1481 = vadd.f32 0.0, %v1480
        %1482 = vmatmul.f32.gmra.mxu0 %v1225
        %v1483 = vpop.f32.mrf.mxu0
        %v1484 = vadd.f32 0.0, %v1483
        %1485 = vmatmul.f32.gmra.mxu0 %v1226
        %v1486 = vpop.f32.mrf.mxu0
        %v1487 = vadd.f32 0.0, %v1486
        %1488 = vmatmul.f32.gmra.mxu0 %v1227
        %v1489 = vpop.f32.mrf.mxu0
        %v1490 = vadd.f32 0.0, %v1489
        %1491 = vmatmul.f32.gmra.mxu0 %v1228
        %v1492 = vpop.f32.mrf.mxu0
        %v1493 = vadd.f32 0.0, %v1492
        %1494 = vmatmul.f32.gmra.mxu0 %v1229
        %v1495 = vpop.f32.mrf.mxu0
        %v1496 = vadd.f32 0.0, %v1495
        %1497 = vmatmul.f32.gmra.mxu0 %v1230
        %v1498 = vpop.f32.mrf.mxu0
        %v1499 = vadd.f32 0.0, %v1498
        %1500 = vmatmul.f32.gmra.mxu0 %v1231
        %v1501 = vpop.f32.mrf.mxu0
        %v1502 = vadd.f32 0.0, %v1501
        %1503 = vmatmul.f32.gmra.mxu0 %v1232
        %v1504 = vpop.f32.mrf.mxu0
        %v1505 = vadd.f32 0.0, %v1504
        %1506 = vdwg.mxu0
        %1507 = vmatpush.msra.mxu0 %v1280
        %1508 = vmatpush.msra.mxu0 %v1277
        %1509 = vmatpush.msra.mxu0 %v1274
        %1510 = vmatpush.msra.mxu0 %v1271
        %1511 = vmatpush.msra.mxu0 %v1268
        %1512 = vmatpush.msra.mxu0 %v1265
        %1513 = vmatpush.msra.mxu0 %v1262
        %1514 = vmatpush.msra.mxu0 %v1259
        %1515 = vmatpush.msra.mxu0 %v1256
        %1516 = vmatpush.msra.mxu0 %v1253
        %1517 = vmatpush.msra.mxu0 %v1250
        %1518 = vmatpush.msra.mxu0 %v1247
        %1519 = vmatpush.msra.mxu0 %v1244
        %1520 = vmatpush.msra.mxu0 %v1241
        %1521 = vmatpush.msra.mxu0 %v1238
        %1522 = vmatpush.msra.mxu0 %v1235
        %1523 = vmatmul.f32.gmra.mxu0 %v1201
        %v1524 = vpop.f32.mrf.mxu0
        %v1525 = vadd.f32 0.0, %v1524
        %1526 = vmatmul.f32.gmra.mxu0 %v1202
        %v1527 = vpop.f32.mrf.mxu0
        %v1528 = vadd.f32 0.0, %v1527
        %1529 = vmatmul.f32.gmra.mxu0 %v1203
        %v1530 = vpop.f32.mrf.mxu0
        %v1531 = vadd.f32 0.0, %v1530
        %1532 = vmatmul.f32.gmra.mxu0 %v1204
        %v1533 = vpop.f32.mrf.mxu0
        %v1534 = vadd.f32 0.0, %v1533
        %1535 = vmatmul.f32.gmra.mxu0 %v1205
        %v1536 = vpop.f32.mrf.mxu0
        %v1537 = vadd.f32 0.0, %v1536
        %1538 = vmatmul.f32.gmra.mxu0 %v1206
        %v1539 = vpop.f32.mrf.mxu0
        %v1540 = vadd.f32 0.0, %v1539
        %1541 = vmatmul.f32.gmra.mxu0 %v1207
        %v1542 = vpop.f32.mrf.mxu0
        %v1543 = vadd.f32 0.0, %v1542
        %1544 = vmatmul.f32.gmra.mxu0 %v1208
        %v1545 = vpop.f32.mrf.mxu0
        %v1546 = vadd.f32 0.0, %v1545
        %1547 = vmatmul.f32.gmra.mxu0 %v1209
        %v1548 = vpop.f32.mrf.mxu0
        %v1549 = vadd.f32 0.0, %v1548
        %1550 = vmatmul.f32.gmra.mxu0 %v1210
        %v1551 = vpop.f32.mrf.mxu0
        %v1552 = vadd.f32 0.0, %v1551
        %1553 = vmatmul.f32.gmra.mxu0 %v1211
        %v1554 = vpop.f32.mrf.mxu0
        %v1555 = vadd.f32 0.0, %v1554
        %1556 = vmatmul.f32.gmra.mxu0 %v1212
        %v1557 = vpop.f32.mrf.mxu0
        %v1558 = vadd.f32 0.0, %v1557
        %1559 = vmatmul.f32.gmra.mxu0 %v1213
        %v1560 = vpop.f32.mrf.mxu0
        %v1561 = vadd.f32 0.0, %v1560
        %1562 = vmatmul.f32.gmra.mxu0 %v1214
        %v1563 = vpop.f32.mrf.mxu0
        %v1564 = vadd.f32 0.0, %v1563
        %1565 = vmatmul.f32.gmra.mxu0 %v1215
        %v1566 = vpop.f32.mrf.mxu0
        %v1567 = vadd.f32 0.0, %v1566
        %1568 = vmatmul.f32.gmra.mxu0 %v1216
        %v1569 = vpop.f32.mrf.mxu0
        %v1570 = vadd.f32 0.0, %v1569
        %1571 = vmatmul.f32.gmra.mxu0 %v1217
        %v1572 = vpop.f32.mrf.mxu0
        %v1573 = vadd.f32 0.0, %v1572
        %1574 = vmatmul.f32.gmra.mxu0 %v1218
        %v1575 = vpop.f32.mrf.mxu0
        %v1576 = vadd.f32 0.0, %v1575
        %1577 = vmatmul.f32.gmra.mxu0 %v1219
        %v1578 = vpop.f32.mrf.mxu0
        %v1579 = vadd.f32 0.0, %v1578
        %1580 = vmatmul.f32.gmra.mxu0 %v1220
        %v1581 = vpop.f32.mrf.mxu0
        %v1582 = vadd.f32 0.0, %v1581
        %1583 = vmatmul.f32.gmra.mxu0 %v1221
        %v1584 = vpop.f32.mrf.mxu0
        %v1585 = vadd.f32 0.0, %v1584
        %1586 = vmatmul.f32.gmra.mxu0 %v1222
        %v1587 = vpop.f32.mrf.mxu0
        %v1588 = vadd.f32 0.0, %v1587
        %1589 = vmatmul.f32.gmra.mxu0 %v1223
        %v1590 = vpop.f32.mrf.mxu0
        %v1591 = vadd.f32 0.0, %v1590
        %1592 = vmatmul.f32.gmra.mxu0 %v1224
        %v1593 = vpop.f32.mrf.mxu0
        %v1594 = vadd.f32 0.0, %v1593
        %1595 = vmatmul.f32.gmra.mxu0 %v1225
        %v1596 = vpop.f32.mrf.mxu0
        %v1597 = vadd.f32 0.0, %v1596
        %1598 = vmatmul.f32.gmra.mxu0 %v1226
        %v1599 = vpop.f32.mrf.mxu0
        %v1600 = vadd.f32 0.0, %v1599
        %1601 = vmatmul.f32.gmra.mxu0 %v1227
        %v1602 = vpop.f32.mrf.mxu0
        %v1603 = vadd.f32 0.0, %v1602
        %1604 = vmatmul.f32.gmra.mxu0 %v1228
        %v1605 = vpop.f32.mrf.mxu0
        %v1606 = vadd.f32 0.0, %v1605
        %1607 = vmatmul.f32.gmra.mxu0 %v1229
        %v1608 = vpop.f32.mrf.mxu0
        %v1609 = vadd.f32 0.0, %v1608
        %1610 = vmatmul.f32.gmra.mxu0 %v1230
        %v1611 = vpop.f32.mrf.mxu0
        %v1612 = vadd.f32 0.0, %v1611
        %1613 = vmatmul.f32.gmra.mxu0 %v1231
        %v1614 = vpop.f32.mrf.mxu0
        %v1615 = vadd.f32 0.0, %v1614
        %1616 = vmatmul.f32.gmra.mxu0 %v1232
        %v1617 = vpop.f32.mrf.mxu0
        %v1618 = vadd.f32 0.0, %v1617
        %1619 = vdwg.mxu0
        %1620 = vst [vmem:[%s306] sm:$0xff] %v1299
        %1621 = vst [vmem:[%s306 + $0x8] sm:$0xff] %v1302
        %1622 = vst [vmem:[%s306 + $0x10] sm:$0xff] %v1305
        %1623 = vst [vmem:[%s306 + $0x18] sm:$0xff] %v1308
        %1624 = vst [vmem:[%s306 + $0x20] sm:$0xff] %v1311
        %1625 = vst [vmem:[%s306 + $0x28] sm:$0xff] %v1314
        %1626 = vst [vmem:[%s306 + $0x30] sm:$0xff] %v1317
        %1627 = vst [vmem:[%s306 + $0x38] sm:$0xff] %v1320
        %1628 = vst [vmem:[%s306 + $0x40] sm:$0xff] %v1323
        %1629 = vst [vmem:[%s306 + $0x48] sm:$0xff] %v1326
        %1630 = vst [vmem:[%s306 + $0x50] sm:$0xff] %v1329
        %1631 = vst [vmem:[%s306 + $0x58] sm:$0xff] %v1332
        %1632 = vst [vmem:[%s306 + $0x60] sm:$0xff] %v1335
        %1633 = vst [vmem:[%s306 + $0x68] sm:$0xff] %v1338
        %1634 = vst [vmem:[%s306 + $0x70] sm:$0xff] %v1341
        %1635 = vst [vmem:[%s306 + $0x78] sm:$0xff] %v1344
        %1636 = vst [vmem:[%s306 + $0x80] sm:$0xff] %v1347
        %1637 = vst [vmem:[%s306 + $0x88] sm:$0xff] %v1350
        %1638 = vst [vmem:[%s306 + $0x90] sm:$0xff] %v1353
        %1639 = vst [vmem:[%s306 + $0x98] sm:$0xff] %v1356
        %1640 = vst [vmem:[%s306 + $0xa0] sm:$0xff] %v1359
        %1641 = vst [vmem:[%s306 + $0xa8] sm:$0xff] %v1362
        %1642 = vst [vmem:[%s306 + $0xb0] sm:$0xff] %v1365
        %1643 = vst [vmem:[%s306 + $0xb8] sm:$0xff] %v1368
        %1644 = vst [vmem:[%s306 + $0xc0] sm:$0xff] %v1371
        %1645 = vst [vmem:[%s306 + $0xc8] sm:$0xff] %v1374
        %1646 = vst [vmem:[%s306 + $0xd0] sm:$0xff] %v1377
        %1647 = vst [vmem:[%s306 + $0xd8] sm:$0xff] %v1380
        %1648 = vst [vmem:[%s306 + $0xe0] sm:$0xff] %v1383
        %1649 = vst [vmem:[%s306 + $0xe8] sm:$0xff] %v1386
        %1650 = vst [vmem:[%s306 + $0xf0] sm:$0xff] %v1389
        %1651 = vst [vmem:[%s306 + $0xf8] sm:$0xff] %v1392
        %1652 = vst [vmem:[%s313] sm:$0xff] %v1412
        %1653 = vst [vmem:[%s313 + $0x8] sm:$0xff] %v1415
        %1654 = vst [vmem:[%s313 + $0x10] sm:$0xff] %v1418
        %1655 = vst [vmem:[%s313 + $0x18] sm:$0xff] %v1421
        %1656 = vst [vmem:[%s313 + $0x20] sm:$0xff] %v1424
        %1657 = vst [vmem:[%s313 + $0x28] sm:$0xff] %v1427
        %1658 = vst [vmem:[%s313 + $0x30] sm:$0xff] %v1430
        %1659 = vst [vmem:[%s313 + $0x38] sm:$0xff] %v1433
        %1660 = vst [vmem:[%s313 + $0x40] sm:$0xff] %v1436
        %1661 = vst [vmem:[%s313 + $0x48] sm:$0xff] %v1439
        %1662 = vst [vmem:[%s313 + $0x50] sm:$0xff] %v1442
        %1663 = vst [vmem:[%s313 + $0x58] sm:$0xff] %v1445
        %1664 = vst [vmem:[%s313 + $0x60] sm:$0xff] %v1448
        %1665 = vst [vmem:[%s313 + $0x68] sm:$0xff] %v1451
        %1666 = vst [vmem:[%s313 + $0x70] sm:$0xff] %v1454
        %1667 = vst [vmem:[%s313 + $0x78] sm:$0xff] %v1457
        %1668 = vst [vmem:[%s313 + $0x80] sm:$0xff] %v1460
        %1669 = vst [vmem:[%s313 + $0x88] sm:$0xff] %v1463
        %1670 = vst [vmem:[%s313 + $0x90] sm:$0xff] %v1466
        %1671 = vst [vmem:[%s313 + $0x98] sm:$0xff] %v1469
        %1672 = vst [vmem:[%s313 + $0xa0] sm:$0xff] %v1472
        %1673 = vst [vmem:[%s313 + $0xa8] sm:$0xff] %v1475
        %1674 = vst [vmem:[%s313 + $0xb0] sm:$0xff] %v1478
        %1675 = vst [vmem:[%s313 + $0xb8] sm:$0xff] %v1481
        %1676 = vst [vmem:[%s313 + $0xc0] sm:$0xff] %v1484
        %1677 = vst [vmem:[%s313 + $0xc8] sm:$0xff] %v1487
        %1678 = vst [vmem:[%s313 + $0xd0] sm:$0xff] %v1490
        %1679 = vst [vmem:[%s313 + $0xd8] sm:$0xff] %v1493
        %1680 = vst [vmem:[%s313 + $0xe0] sm:$0xff] %v1496
        %1681 = vst [vmem:[%s313 + $0xe8] sm:$0xff] %v1499
        %1682 = vst [vmem:[%s313 + $0xf0] sm:$0xff] %v1502
        %1683 = vst [vmem:[%s313 + $0xf8] sm:$0xff] %v1505
        %1684 = vst [vmem:[%s320] sm:$0xff] %v1525
        %1685 = vst [vmem:[%s320 + $0x8] sm:$0xff] %v1528
        %1686 = vst [vmem:[%s320 + $0x10] sm:$0xff] %v1531
        %1687 = vst [vmem:[%s320 + $0x18] sm:$0xff] %v1534
        %1688 = vst [vmem:[%s320 + $0x20] sm:$0xff] %v1537
        %1689 = vst [vmem:[%s320 + $0x28] sm:$0xff] %v1540
        %1690 = vst [vmem:[%s320 + $0x30] sm:$0xff] %v1543
        %1691 = vst [vmem:[%s320 + $0x38] sm:$0xff] %v1546
        %1692 = vst [vmem:[%s320 + $0x40] sm:$0xff] %v1549
        %1693 = vst [vmem:[%s320 + $0x48] sm:$0xff] %v1552
        %1694 = vst [vmem:[%s320 + $0x50] sm:$0xff] %v1555
        %1695 = vst [vmem:[%s320 + $0x58] sm:$0xff] %v1558
        %1696 = vst [vmem:[%s320 + $0x60] sm:$0xff] %v1561
        %1697 = vst [vmem:[%s320 + $0x68] sm:$0xff] %v1564
        %1698 = vst [vmem:[%s320 + $0x70] sm:$0xff] %v1567
        %1699 = vst [vmem:[%s320 + $0x78] sm:$0xff] %v1570
        %1700 = vst [vmem:[%s320 + $0x80] sm:$0xff] %v1573
        %1701 = vst [vmem:[%s320 + $0x88] sm:$0xff] %v1576
        %1702 = vst [vmem:[%s320 + $0x90] sm:$0xff] %v1579
        %1703 = vst [vmem:[%s320 + $0x98] sm:$0xff] %v1582
        %1704 = vst [vmem:[%s320 + $0xa0] sm:$0xff] %v1585
        %1705 = vst [vmem:[%s320 + $0xa8] sm:$0xff] %v1588
        %1706 = vst [vmem:[%s320 + $0xb0] sm:$0xff] %v1591
        %1707 = vst [vmem:[%s320 + $0xb8] sm:$0xff] %v1594
        %1708 = vst [vmem:[%s320 + $0xc0] sm:$0xff] %v1597
        %1709 = vst [vmem:[%s320 + $0xc8] sm:$0xff] %v1600
        %1710 = vst [vmem:[%s320 + $0xd0] sm:$0xff] %v1603
        %1711 = vst [vmem:[%s320 + $0xd8] sm:$0xff] %v1606
        %1712 = vst [vmem:[%s320 + $0xe0] sm:$0xff] %v1609
        %1713 = vst [vmem:[%s320 + $0xe8] sm:$0xff] %v1612
        %1714 = vst [vmem:[%s320 + $0xf0] sm:$0xff] %v1615
        %1715 = vst [vmem:[%s320 + $0xf8] sm:$0xff] %v1618
        %s1716 = sand.u32 %s125, 1
        %s1717 = scalar_lea.sflag [#allocation4], %s1716
        %s1718 = sand.u32 %s125, 1
        %s1719 = smul.addr %s1718, 256
        %s1720 = scalar_lea.vmem [#allocation8], %s1719
        %s1721 = sand.u32 %s28, 1
        %s1722 = scalar_lea.sflag [#allocation10], %s1721
        %s1723 = sand.u32 %s151, 1
        %s1724 = smul.addr %s1723, 256
        %s1725 = scalar_lea.vmem [#allocation9], %s1724
        %s1726 = sand.u32 %s28, 1
        %s1727 = scalar_lea.sflag [#allocation10], %s1726
        %s1728 = sand.u32 %s177, 1
        %s1729 = smul.addr %s1728, 256
        %s1730 = scalar_lea.vmem [#allocation11], %s1729
        // Predicated region
        $region49: #{tpu_custom_call.1} parent=35 // pred_check
          %p1731 = pneg %p135
        $region50: #{tpu_custom_call.1} parent=35 // pred_check_branch
          %1733 = sbr.rel (%p1731) target = $region52
        $region51: #{tpu_custom_call.1} parent=35 // pred_region
          %1735 = vsyncadd %s1717, 0
          %s1736 = smul.addr %s28, 32
          %s1737 = smul.addr %s1736, 8
          %s1738 = scalar_lea.hbm %s4, %s1737
          %s1739 = sshll.u32 %s1720, 4
          %s1740 = int_to_ptr.vmem [resolvable:$true] %s1739
          %s1741 = sshll.u32 %s1738, 4
          %s1742 = int_to_ptr.hbm [resolvable:$true] %s1741
          %1747 = dma.vmem_to_hbm [thread:$0]  %s1740, 4096, %s1742, %s1717, 128, 128, 8
        $region52: #{tpu_custom_call.1} parent=35 // pred_fallthru
          _
        // Predicated region
        $region53: #{tpu_custom_call.1} parent=35 // pred_check
          %p1748 = pneg %p161
        $region54: #{tpu_custom_call.1} parent=35 // pred_check_branch
          %1750 = sbr.rel (%p1748) target = $region56
        $region55: #{tpu_custom_call.1} parent=35 // pred_region
          %1752 = vsyncadd %s1722, 0
          %s1753 = smul.addr %s28, 32
          %s1754 = smul.addr %s1753, 8
          %s1755 = scalar_lea.hbm %s5, %s1754
          %s1756 = sshll.u32 %s1725, 4
          %s1757 = int_to_ptr.vmem [resolvable:$true] %s1756
          %s1758 = sshll.u32 %s1755, 4
          %s1759 = int_to_ptr.hbm [resolvable:$true] %s1758
          %1764 = dma.vmem_to_hbm [thread:$0]  %s1757, 4096, %s1759, %s1722, 128, 128, 8
        $region56: #{tpu_custom_call.1} parent=35 // pred_fallthru
          _
        // Predicated region
        $region57: #{tpu_custom_call.1} parent=35 // pred_check
          %p1765 = pneg %p187
        $region58: #{tpu_custom_call.1} parent=35 // pred_check_branch
          %1767 = sbr.rel (%p1765) target = $region60
        $region59: #{tpu_custom_call.1} parent=35 // pred_region
          %1769 = vsyncadd %s1727, 0
          %s1770 = smul.addr %s28, 32
          %s1771 = smul.addr %s1770, 8
          %s1772 = scalar_lea.hbm %s6, %s1771
          %s1773 = sshll.u32 %s1730, 4
          %s1774 = int_to_ptr.vmem [resolvable:$true] %s1773
          %s1775 = sshll.u32 %s1772, 4
          %s1776 = int_to_ptr.hbm [resolvable:$true] %s1775
          %1781 = dma.vmem_to_hbm [thread:$0]  %s1774, 4096, %s1776, %s1727, 128, 128, 8
        $region60: #{tpu_custom_call.1} parent=35 // pred_fallthru
          _
      $region36: #{tpu_custom_call.1} parent=5 // pred_fallthru
        _
      %p1782 = scmp.le.s32.totalorder 2, %s23
      // Predicated region
      $region61: #{tpu_custom_call.1} parent=5 // pred_check
        %p1783 = pneg %p1782
      $region62: #{tpu_custom_call.1} parent=5 // pred_check_branch
        %1785 = sbr.rel (%p1783) target = $region64
      $region63: #{tpu_custom_call.1} parent=5 // pred_region
        %s1786 = ssub.s32 %s23, 2
        // Predicated region
        $region65: #{tpu_custom_call.1} parent=63 // pred_check
          %p1787 = pneg %p141
        $region66: #{tpu_custom_call.1} parent=63 // pred_check_branch
          %1789 = sbr.rel (%p1787) target = $region68
        $region67: #{tpu_custom_call.1} parent=63 // pred_region
          %s1790 = sand.u32 %s126, 1
          %s1791 = scalar_lea.sflag [#allocation4], %s1790
          %s1792 = sand.u32 %s126, 1
          %s1793 = smul.addr %s1792, 256
          %s1794 = scalar_lea.vmem [#allocation8], %s1793
          %1796 = dma.done %s1791, 4096
        $region68: #{tpu_custom_call.1} parent=63 // pred_fallthru
          _
        // Predicated region
        $region69: #{tpu_custom_call.1} parent=63 // pred_check
          %p1797 = pneg %p167
        $region70: #{tpu_custom_call.1} parent=63 // pred_check_branch
          %1799 = sbr.rel (%p1797) target = $region72
        $region71: #{tpu_custom_call.1} parent=63 // pred_region
          %s1800 = sand.u32 %s29, 1
          %s1801 = scalar_lea.sflag [#allocation10], %s1800
          %s1802 = sand.u32 %s152, 1
          %s1803 = smul.addr %s1802, 256
          %s1804 = scalar_lea.vmem [#allocation9], %s1803
          %1806 = dma.done %s1801, 4096
        $region72: #{tpu_custom_call.1} parent=63 // pred_fallthru
          _
        // Predicated region
        $region73: #{tpu_custom_call.1} parent=63 // pred_check
          %p1807 = pneg %p193
        $region74: #{tpu_custom_call.1} parent=63 // pred_check_branch
          %1809 = sbr.rel (%p1807) target = $region76
        $region75: #{tpu_custom_call.1} parent=63 // pred_region
          %s1810 = sand.u32 %s29, 1
          %s1811 = scalar_lea.sflag [#allocation10], %s1810
          %s1812 = sand.u32 %s178, 1
          %s1813 = smul.addr %s1812, 256
          %s1814 = scalar_lea.vmem [#allocation11], %s1813
          %1816 = dma.done %s1811, 4096
        $region76: #{tpu_custom_call.1} parent=63 // pred_fallthru
          _
      $region64: #{tpu_custom_call.1} parent=5 // pred_fallthru
        _
    $region6: #{tpu_custom_call.1} parent=1 // loop_footer
      %s27 = sadd.s32 1, %s23
    $region7: #{tpu_custom_call.1} parent=1 // loop_footer_branch
      %22 = sbr.rel target = $region3
    $region8: #{tpu_custom_call.1} parent=1 // loop_exit
      _
    %1817 = vsyncpa [#allocation3], 1
    %s1818 = scalar_lea.sflag [#allocation3], 1
    %1819 = vsyncpa %s1818, 1
    %1820 = vsyncpa [#allocation6], 1
    %1821 = vsyncpa [#allocation4], 1
    %s1822 = scalar_lea.sflag [#allocation4], 1
    %1823 = vsyncpa %s1822, 1
    %1824 = vsyncpa [#allocation10], 1
    %s1825 = scalar_lea.sflag [#allocation10], 1
    %1826 = vsyncpa %s1825, 1

</llo_original>
